<compile_context>
chip_gen: v7x
topology: tpu7x:2x2x1
jax: 0.10.0
libtpu: 0.0.40
codegen_flags: <defaults>
</compile_context>

<pallas_src>
import functools

import jax
import jax.numpy as jnp
import numpy as np
from jax.experimental import pallas as pl
from jax.experimental.pallas import tpu as pltpu


def _global_attention_kernel(q_ref, h_ref, w1t_ref, w2c_ref, w2q_ref, out_ref,
                             q1_sc, m_sc, l_sc, acc_sc, *, seq_len, sk):
    """One (batch-tile, seq-chunk) step of GlobalAttention.

    q_ref   (Bt, Hd)       query tile (same block for every seq chunk)
    h_ref   (Bt, Sk, Hd)   current sequence chunk of the context
    w1t_ref (Hd, Hd)       W1^T
    w2c_ref (Hd, Hd)       top half of W2^T   (applied to attention context)
    w2q_ref (Hd, Hd)       bottom half of W2^T (applied to the query)
    out_ref (Bt, Hd)       output tile (written on the last seq chunk)
    q1_sc   (Bt, Hd)       scratch: L1(q), computed once per batch tile
    m_sc    (Bt, 1)        scratch: running row max of scores
    l_sc    (Bt, 1)        scratch: running sum of exp(scores - m)
    acc_sc  (Bt, Hd)       scratch: running unnormalized context
    """
    s_idx = pl.program_id(1)

    @pl.when(s_idx == 0)
    def _init():
        # q1 = L1(q) -- dense MXU matmul, done once per batch tile.
        q1_sc[...] = jnp.dot(q_ref[...], w1t_ref[...],
                             preferred_element_type=jnp.float32,
                             precision=jax.lax.Precision.HIGHEST)
        m_sc[...] = jnp.full(m_sc.shape, -jnp.inf, dtype=jnp.float32)
        l_sc[...] = jnp.zeros(l_sc.shape, dtype=jnp.float32)
        acc_sc[...] = jnp.zeros(acc_sc.shape, dtype=jnp.float32)

    hc = h_ref[...]                                        # (Bt, Sk, Hd)
    q1 = q1_sc[...]                                        # (Bt, Hd)

    # scores[b, s] = <H[b, s, :], q1[b, :]>   (VPU multiply + lane reduce)
    scores = jnp.sum(hc * q1[:, None, :], axis=-1)         # (Bt, Sk)

    # Mask out-of-range sequence positions on a ragged final chunk so they
    # contribute exp(-inf) = 0 to the online softmax.
    if seq_len % sk != 0:
        col = jax.lax.broadcasted_iota(jnp.int32, scores.shape, 1)
        valid = (s_idx * sk + col) < seq_len
        scores = jnp.where(valid, scores, -jnp.inf)

    # Online (flash-style) softmax update with unnormalized context.
    m_prev = m_sc[...]
    m_new = jnp.maximum(m_prev, jnp.max(scores, axis=-1, keepdims=True))
    alpha = jnp.exp(m_prev - m_new)                        # (Bt, 1)
    e = jnp.exp(scores - m_new)                            # (Bt, Sk)
    l_sc[...] = alpha * l_sc[...] + jnp.sum(e, axis=-1, keepdims=True)
    acc_sc[...] = alpha * acc_sc[...] + jnp.sum(e[:, :, None] * hc, axis=1)
    m_sc[...] = m_new

    @pl.when(s_idx == pl.num_programs(1) - 1)
    def _finalize():
        # Deferred normalization: one divide over (Bt, Hd) instead of (Bt, S).
        ctx = acc_sc[...] / l_sc[...]
        # tanh( [ctx, q] @ W2^T )  ==  tanh( ctx @ W2c + q @ W2q )
        out = jnp.tanh(
            jnp.dot(ctx, w2c_ref[...],
                    preferred_element_type=jnp.float32,
                    precision=jax.lax.Precision.HIGHEST)
            + jnp.dot(q_ref[...], w2q_ref[...],
                      preferred_element_type=jnp.float32,
                      precision=jax.lax.Precision.HIGHEST))
        out_ref[...] = out.astype(out_ref.dtype)


def global_attention(q, h_ctx, w1t, w2c_t, w2q_t, *, block_b=256,
                     target_chunk_bytes=4 * 1024 * 1024):
    """
    q      (B, Hd)     f32 query
    h_ctx  (B, S, Hd)  f32 context
    w1t    (Hd, Hd)    W1^T
    w2c_t  (Hd, Hd)    top half of W2^T (context half)
    w2q_t  (Hd, Hd)    bottom half of W2^T (query half)
    returns (B, Hd) f32
    """
    B, Hd = q.shape
    _, S, _ = h_ctx.shape

    # ---- batch tile -------------------------------------------------------
    if B > block_b:
        bt = block_b                                  # multiple of 8
    elif B >= 16:
        # Split into two parallel grid steps so dual-TC chips (v7x) use both
        # TensorCores even for a single-tile-sized batch.
        bt = ((-(-B // 2)) + 7) // 8 * 8              # round_up(ceil(B/2), 8)
    else:
        bt = B                                        # block == full dim

    # ---- sequence chunk (bounds VMEM independently of S) ------------------
    sk = max(1, target_chunk_bytes // max(1, bt * Hd * 4))
    if sk >= S:
        sk = S
    else:
        sk = max(8, (sk // 8) * 8)                    # (8,128) sublane rule
        if sk > S:
            sk = S

    grid = (pl.cdiv(B, bt), pl.cdiv(S, sk))

    kernel = functools.partial(_global_attention_kernel, seq_len=S, sk=sk)

    # Advisory cost so XLA can overlap neighbours (e.g. the encoder) with us.
    flops = int(4 * B * S * Hd + 6 * B * Hd * Hd)
    bytes_accessed = int(4 * (B * S * Hd + 2 * B * Hd + 3 * Hd * Hd))
    transcendentals = int(B * S + B * Hd)

    out = pl.pallas_call(
        kernel,
        out_shape=jax.ShapeDtypeStruct((B, Hd), jnp.float32),
        grid_spec=pltpu.PrefetchScalarGridSpec(
            num_scalar_prefetch=0,
            grid=grid,
            in_specs=[
                pl.BlockSpec((bt, Hd), lambda i, s: (i, 0)),        # q tile
                pl.BlockSpec((bt, sk, Hd), lambda i, s: (i, s, 0)),  # H chunk
                pl.BlockSpec((Hd, Hd), lambda i, s: (0, 0)),        # W1^T
                pl.BlockSpec((Hd, Hd), lambda i, s: (0, 0)),        # W2^T ctx
                pl.BlockSpec((Hd, Hd), lambda i, s: (0, 0)),        # W2^T q
            ],
            out_specs=pl.BlockSpec((bt, Hd), lambda i, s: (i, 0)),
            scratch_shapes=[
                pltpu.VMEM((bt, Hd), jnp.float32),   # q1 = L1(q)
                pltpu.VMEM((bt, 1), jnp.float32),    # running max m
                pltpu.VMEM((bt, 1), jnp.float32),    # running denom l
                pltpu.VMEM((bt, Hd), jnp.float32),   # unnormalized context
            ],
        ),
        compiler_params=pltpu.CompilerParams(
            dimension_semantics=("parallel", "arbitrary"),
            # 64 MiB is above the scoped defaults (16/32 MiB) and within the
            # physical VMEM of v5e / v6e (128 MiB) and v7x (64 MiB).
            vmem_limit_bytes=64 * 1024 * 1024,
        ),
        cost_estimate=pl.CostEstimate(
            flops=flops,
            transcendentals=transcendentals,
            bytes_accessed=bytes_accessed),
    )(q, h_ctx, w1t, w2c_t, w2q_t)

    return out


class PallasGlobalAttention:
    """JAX/Pallas port of t2vec GlobalAttention (inference forward)."""

    def __init__(self, hidden_size, *, key):
        self.hidden_size = hidden_size
        k1, k2 = jax.random.split(key)
        # nn.Linear init: U(-1/sqrt(fan_in), 1/sqrt(fan_in)), bias=False.
        b1 = 1.0 / np.sqrt(hidden_size)
        b2 = 1.0 / np.sqrt(2 * hidden_size)
        self.w1 = jax.random.uniform(k1, (hidden_size, hidden_size),
                                     jnp.float32, -b1, b1)
        self.w2 = jax.random.uniform(k2, (hidden_size, 2 * hidden_size),
                                     jnp.float32, -b2, b2)
        # Pre-transpose / pre-split the weights ONCE (avoids per-call XLA
        # transpose + slice ops and the extra HBM copies they generate).
        self.w1t = jnp.asarray(self.w1.T)
        w2t = jnp.asarray(self.w2.T)
        self.w2c_t = jnp.asarray(w2t[:hidden_size])
        self.w2q_t = jnp.asarray(w2t[hidden_size:])

    def forward(self, q, h_ctx):
        return global_attention(q, h_ctx, self.w1t, self.w2c_t, self.w2q_t)


def _reference_global_attention(q, h_ctx, w1, w2):
    """Pure-JAX reference mirroring the PyTorch module."""
    q1 = q @ w1.T                                        # (B, Hd)
    a = jnp.einsum("bsh,bh->bs", h_ctx, q1)              # (B, S)
    a = jax.nn.softmax(a, axis=1)
    c = jnp.einsum("bs,bsh->bh", a, h_ctx)               # (B, Hd)
    c = jnp.concatenate([c, q], axis=1)                  # (B, 2Hd)
    return jnp.tanh(c @ w2.T)                            # (B, Hd)


if __name__ == "__main__":
    key = jax.random.PRNGKey(0)
    k_q, k_h, k_params = jax.random.split(key, 3)

    batch = 2
    seq_len = 8
    hidden_size = 32

    attn = PallasGlobalAttention(hidden_size, key=k_params)

    q = jax.random.normal(k_q, (batch, hidden_size), jnp.float32)
    h_ctx = jax.random.normal(k_h, (batch, seq_len, hidden_size), jnp.float32)

    out = attn.forward(q, h_ctx)
    out = jax.block_until_ready(out)

    assert out.shape == (batch, hidden_size)
    assert bool(jnp.all(jnp.isfinite(out)))

    ref = _reference_global_attention(q, h_ctx, attn.w1, attn.w2)
    np.testing.assert_allclose(np.asarray(out), np.asarray(ref),
                               rtol=1e-5, atol=1e-5)
    print("KERNEL_OK")
</pallas_src>

<mosaic_0001>
module attributes {stable_mosaic.version = 11 : i64} {
  func.func @_global_attention_kernel(%arg0: i32, %arg1: i32, %arg2: memref<2x32xf32, #tpu.memory_space<vmem>>, %arg3: memref<2x8x32xf32, #tpu.memory_space<vmem>>, %arg4: memref<32x32xf32, #tpu.memory_space<vmem>>, %arg5: memref<32x32xf32, #tpu.memory_space<vmem>>, %arg6: memref<32x32xf32, #tpu.memory_space<vmem>>, %arg7: memref<2x32xf32, #tpu.memory_space<vmem>>, %arg8: memref<2x32xf32, #tpu.memory_space<vmem>>, %arg9: memref<2x1xf32, #tpu.memory_space<vmem>>, %arg10: memref<2x1xf32, #tpu.memory_space<vmem>>, %arg11: memref<2x32xf32, #tpu.memory_space<vmem>>) attributes {dimension_semantics = [#tpu.dimension_semantics<parallel>, #tpu.dimension_semantics<arbitrary>], iteration_bounds = array<i64: 1, 1>, scalar_prefetch = 0 : i64, scratch_operands = 4 : i64, tpu.core_type = #tpu.core_type<tc>, window_params = [{transform_indices = @transform_0, window_bounds = array<i64: 2, 32>}, {transform_indices = @transform_1, window_bounds = array<i64: 2, 8, 32>}, {pipeline_mode = #tpu.pipeline_mode<synchronous>, transform_indices = @transform_2, window_bounds = array<i64: 32, 32>}, {pipeline_mode = #tpu.pipeline_mode<synchronous>, transform_indices = @transform_3, window_bounds = array<i64: 32, 32>}, {pipeline_mode = #tpu.pipeline_mode<synchronous>, transform_indices = @transform_4, window_bounds = array<i64: 32, 32>}, {transform_indices = @transform_5, window_bounds = array<i64: 2, 32>}]} {
    %c0_i32 = arith.constant 0 : i32
    %0 = arith.cmpi eq, %arg1, %c0_i32 : i32
    %1 = arith.extui %0 : i1 to i32
    %c0_i32_0 = arith.constant 0 : i32
    %2 = arith.cmpi ne, %1, %c0_i32_0 : i32
    scf.if %2 {
      %c0_22 = arith.constant 0 : index
      %c0_23 = arith.constant 0 : index
      %37 = vector.load %arg2[%c0_22, %c0_23] : memref<2x32xf32, #tpu.memory_space<vmem>>, vector<2x32xf32>
      %c0_24 = arith.constant 0 : index
      %c0_25 = arith.constant 0 : index
      %38 = vector.load %arg4[%c0_24, %c0_25] : memref<32x32xf32, #tpu.memory_space<vmem>>, vector<32x32xf32>
      %cst_26 = arith.constant dense<0.000000e+00> : vector<2x32xf32>
      %39 = tpu.matmul %37, %38, %cst_26 {dimension_numbers = #tpu.dot_dimension_numbers<[1], [0], [0], [1], [0, 0, 1, 1], [], []>, precision = #tpu.contract_precision<fp32>} : vector<2x32xf32>, vector<32x32xf32>, vector<2x32xf32> -> vector<2x32xf32>
      %c0_27 = arith.constant 0 : index
      %c0_28 = arith.constant 0 : index
      %40 = vector.load %arg8[%c0_27, %c0_28] : memref<2x32xf32, #tpu.memory_space<vmem>>, vector<2x32xf32>
      tpu.vector_store %arg8[%c0_27, %c0_28], %39 {strides = array<i32>} : memref<2x32xf32, #tpu.memory_space<vmem>>, vector<2x32xf32>,
      %cst_29 = arith.constant 0xFF800000 : f32
      %41 = vector.broadcast %cst_29 : f32 to vector<2x1xf32>
      %c0_30 = arith.constant 0 : index
      %c0_31 = arith.constant 0 : index
      %42 = vector.load %arg9[%c0_30, %c0_31] : memref<2x1xf32, #tpu.memory_space<vmem>>, vector<2x1xf32>
      tpu.vector_store %arg9[%c0_30, %c0_31], %41 {strides = array<i32>} : memref<2x1xf32, #tpu.memory_space<vmem>>, vector<2x1xf32>,
      %cst_32 = arith.constant 0.000000e+00 : f32
      %43 = vector.broadcast %cst_32 : f32 to vector<2x1xf32>
      %c0_33 = arith.constant 0 : index
      %c0_34 = arith.constant 0 : index
      %44 = vector.load %arg10[%c0_33, %c0_34] : memref<2x1xf32, #tpu.memory_space<vmem>>, vector<2x1xf32>
      tpu.vector_store %arg10[%c0_33, %c0_34], %43 {strides = array<i32>} : memref<2x1xf32, #tpu.memory_space<vmem>>, vector<2x1xf32>,
      %cst_35 = arith.constant 0.000000e+00 : f32
      %45 = vector.broadcast %cst_35 : f32 to vector<2x32xf32>
      %c0_36 = arith.constant 0 : index
      %c0_37 = arith.constant 0 : index
      %46 = vector.load %arg11[%c0_36, %c0_37] : memref<2x32xf32, #tpu.memory_space<vmem>>, vector<2x32xf32>
      tpu.vector_store %arg11[%c0_36, %c0_37], %45 {strides = array<i32>} : memref<2x32xf32, #tpu.memory_space<vmem>>, vector<2x32xf32>,
    } else {
    }
    %c0 = arith.constant 0 : index
    %c0_1 = arith.constant 0 : index
    %c0_2 = arith.constant 0 : index
    %3 = vector.load %arg3[%c0, %c0_1, %c0_2] : memref<2x8x32xf32, #tpu.memory_space<vmem>>, vector<2x8x32xf32>
    %c0_3 = arith.constant 0 : index
    %c0_4 = arith.constant 0 : index
    %4 = vector.load %arg8[%c0_3, %c0_4] : memref<2x32xf32, #tpu.memory_space<vmem>>, vector<2x32xf32>
    %5 = vector.shape_cast %4 : vector<2x32xf32> to vector<2x1x32xf32>
    %6 = vector.broadcast %5 : vector<2x1x32xf32> to vector<2x8x32xf32>
    %7 = arith.mulf %3, %6 : vector<2x8x32xf32>
    %cst = arith.constant dense<0.000000e+00> : vector<2x8xf32>
    %8 = vector.multi_reduction <add>, %7, %cst [2] : vector<2x8x32xf32> to vector<2x8xf32>
    %c0_5 = arith.constant 0 : index
    %c0_6 = arith.constant 0 : index
    %9 = vector.load %arg9[%c0_5, %c0_6] : memref<2x1xf32, #tpu.memory_space<vmem>>, vector<2x1xf32>
    %cst_7 = arith.constant dense<0xFF800000> : vector<2xf32>
    %10 = vector.multi_reduction <maximumf>, %8, %cst_7 [1] : vector<2x8xf32> to vector<2xf32>
    %11 = vector.shape_cast %10 : vector<2xf32> to vector<2x1xf32>
    %12 = arith.maximumf %9, %11 : vector<2x1xf32>
    %13 = arith.subf %9, %12 : vector<2x1xf32>
    %14 = math.exp %13 : vector<2x1xf32>
    %15 = vector.broadcast %12 : vector<2x1xf32> to vector<2x8xf32>
    %16 = arith.subf %8, %15 : vector<2x8xf32>
    %17 = math.exp %16 : vector<2x8xf32>
    %c0_8 = arith.constant 0 : index
    %c0_9 = arith.constant 0 : index
    %18 = vector.load %arg10[%c0_8, %c0_9] : memref<2x1xf32, #tpu.memory_space<vmem>>, vector<2x1xf32>
    %19 = arith.mulf %14, %18 : vector<2x1xf32>
    %cst_10 = arith.constant dense<0.000000e+00> : vector<2xf32>
    %20 = vector.multi_reduction <add>, %17, %cst_10 [1] : vector<2x8xf32> to vector<2xf32>
    %21 = vector.shape_cast %20 : vector<2xf32> to vector<2x1xf32>
    %22 = arith.addf %19, %21 : vector<2x1xf32>
    %c0_11 = arith.constant 0 : index
    %c0_12 = arith.constant 0 : index
    %23 = vector.load %arg10[%c0_11, %c0_12] : memref<2x1xf32, #tpu.memory_space<vmem>>, vector<2x1xf32>
    tpu.vector_store %arg10[%c0_11, %c0_12], %22 {strides = array<i32>} : memref<2x1xf32, #tpu.memory_space<vmem>>, vector<2x1xf32>,
    %c0_13 = arith.constant 0 : index
    %c0_14 = arith.constant 0 : index
    %24 = vector.load %arg11[%c0_13, %c0_14] : memref<2x32xf32, #tpu.memory_space<vmem>>, vector<2x32xf32>
    %25 = vector.broadcast %14 : vector<2x1xf32> to vector<2x32xf32>
    %26 = arith.mulf %25, %24 : vector<2x32xf32>
    %27 = vector.shape_cast %17 : vector<2x8xf32> to vector<2x8x1xf32>
    %28 = vector.broadcast %27 : vector<2x8x1xf32> to vector<2x8x32xf32>
    %29 = arith.mulf %28, %3 : vector<2x8x32xf32>
    %cst_15 = arith.constant dense<0.000000e+00> : vector<2x32xf32>
    %30 = vector.multi_reduction <add>, %29, %cst_15 [1] : vector<2x8x32xf32> to vector<2x32xf32>
    %31 = arith.addf %26, %30 : vector<2x32xf32>
    %c0_16 = arith.constant 0 : index
    %c0_17 = arith.constant 0 : index
    %32 = vector.load %arg11[%c0_16, %c0_17] : memref<2x32xf32, #tpu.memory_space<vmem>>, vector<2x32xf32>
    tpu.vector_store %arg11[%c0_16, %c0_17], %31 {strides = array<i32>} : memref<2x32xf32, #tpu.memory_space<vmem>>, vector<2x32xf32>,
    %c0_18 = arith.constant 0 : index
    %c0_19 = arith.constant 0 : index
    %33 = vector.load %arg9[%c0_18, %c0_19] : memref<2x1xf32, #tpu.memory_space<vmem>>, vector<2x1xf32>
    tpu.vector_store %arg9[%c0_18, %c0_19], %12 {strides = array<i32>} : memref<2x1xf32, #tpu.memory_space<vmem>>, vector<2x1xf32>,
    %c0_i32_20 = arith.constant 0 : i32
    %34 = arith.cmpi eq, %arg1, %c0_i32_20 : i32
    %35 = arith.extui %34 : i1 to i32
    %c0_i32_21 = arith.constant 0 : i32
    %36 = arith.cmpi ne, %35, %c0_i32_21 : i32
    scf.if %36 {
      %c0_22 = arith.constant 0 : index
      %c0_23 = arith.constant 0 : index
      %37 = vector.load %arg11[%c0_22, %c0_23] : memref<2x32xf32, #tpu.memory_space<vmem>>, vector<2x32xf32>
      %c0_24 = arith.constant 0 : index
      %c0_25 = arith.constant 0 : index
      %38 = vector.load %arg10[%c0_24, %c0_25] : memref<2x1xf32, #tpu.memory_space<vmem>>, vector<2x1xf32>
      %39 = vector.broadcast %38 : vector<2x1xf32> to vector<2x32xf32>
      %40 = arith.divf %37, %39 : vector<2x32xf32>
      %c0_26 = arith.constant 0 : index
      %c0_27 = arith.constant 0 : index
      %41 = vector.load %arg5[%c0_26, %c0_27] : memref<32x32xf32, #tpu.memory_space<vmem>>, vector<32x32xf32>
      %cst_28 = arith.constant dense<0.000000e+00> : vector<2x32xf32>
      %42 = tpu.matmul %40, %41, %cst_28 {dimension_numbers = #tpu.dot_dimension_numbers<[1], [0], [0], [1], [0, 0, 1, 1], [], []>, precision = #tpu.contract_precision<fp32>} : vector<2x32xf32>, vector<32x32xf32>, vector<2x32xf32> -> vector<2x32xf32>
      %c0_29 = arith.constant 0 : index
      %c0_30 = arith.constant 0 : index
      %43 = vector.load %arg2[%c0_29, %c0_30] : memref<2x32xf32, #tpu.memory_space<vmem>>, vector<2x32xf32>
      %c0_31 = arith.constant 0 : index
      %c0_32 = arith.constant 0 : index
      %44 = vector.load %arg6[%c0_31, %c0_32] : memref<32x32xf32, #tpu.memory_space<vmem>>, vector<32x32xf32>
      %cst_33 = arith.constant dense<0.000000e+00> : vector<2x32xf32>
      %45 = tpu.matmul %43, %44, %cst_33 {dimension_numbers = #tpu.dot_dimension_numbers<[1], [0], [0], [1], [0, 0, 1, 1], [], []>, precision = #tpu.contract_precision<fp32>} : vector<2x32xf32>, vector<32x32xf32>, vector<2x32xf32> -> vector<2x32xf32>
      %46 = arith.addf %42, %45 : vector<2x32xf32>
      %47 = math.tanh %46 : vector<2x32xf32>
      %c0_34 = arith.constant 0 : index
      %c0_35 = arith.constant 0 : index
      %48 = vector.load %arg7[%c0_34, %c0_35] : memref<2x32xf32, #tpu.memory_space<vmem>>, vector<2x32xf32>
      tpu.vector_store %arg7[%c0_34, %c0_35], %47 {strides = array<i32>} : memref<2x32xf32, #tpu.memory_space<vmem>>, vector<2x32xf32>,
    } else {
    }
    return
  }
  func.func @transform_0(%arg0: i32, %arg1: i32) -> (i32, i32) {
    %c0_i32 = arith.constant 0 : i32
    %c0_i32_0 = arith.constant 0 : i32
    return %arg0, %c0_i32 : i32, i32
  }
  func.func @transform_1(%arg0: i32, %arg1: i32) -> (i32, i32, i32) {
    %c0_i32 = arith.constant 0 : i32
    %c0_i32_0 = arith.constant 0 : i32
    return %arg0, %arg1, %c0_i32 : i32, i32, i32
  }
  func.func @transform_2(%arg0: i32, %arg1: i32) -> (i32, i32) {
    %c0_i32 = arith.constant 0 : i32
    %c0_i32_0 = arith.constant 0 : i32
    %c0_i32_1 = arith.constant 0 : i32
    return %c0_i32, %c0_i32_0 : i32, i32
  }
  func.func @transform_3(%arg0: i32, %arg1: i32) -> (i32, i32) {
    %c0_i32 = arith.constant 0 : i32
    %c0_i32_0 = arith.constant 0 : i32
    %c0_i32_1 = arith.constant 0 : i32
    return %c0_i32, %c0_i32_0 : i32, i32
  }
  func.func @transform_4(%arg0: i32, %arg1: i32) -> (i32, i32) {
    %c0_i32 = arith.constant 0 : i32
    %c0_i32_0 = arith.constant 0 : i32
    %c0_i32_1 = arith.constant 0 : i32
    return %c0_i32, %c0_i32_0 : i32, i32
  }
  func.func @transform_5(%arg0: i32, %arg1: i32) -> (i32, i32) {
    %c0_i32 = arith.constant 0 : i32
    %c0_i32_0 = arith.constant 0 : i32
    return %arg0, %c0_i32 : i32, i32
  }
}

</mosaic_0001>

<llo_original>
// kernel: tpu_custom_call.1
$region0: #{tpu_custom_call.1}
  #allocation0 [shape = 'u32[]', space=smem, size = 0x4, offset = 0x4, fixed_abs, tag = 'smem constant byte address 0x4 - core index']
  #allocation1 [shape = 'u32[144,128]{1,0:T(1,128)}', space=vmem, size = 0x12000, scoped, tag = 'internal scratch']
  #allocation2 [shape = 'f32[2,32]{1,0:T(2,128)}', space=vmem, size = 0x400, scoped, tag = 'scratch operand']
  #allocation3 [shape = 'f32[2,1]{1,0:T(2,128)}', space=vmem, size = 0x400, scoped, tag = 'scratch operand']
  #allocation4 [shape = 'f32[2,1]{1,0:T(2,128)}', space=vmem, size = 0x400, scoped, tag = 'scratch operand']
  #allocation5 [shape = 'f32[2,32]{1,0:T(2,128)}', space=vmem, size = 0x400, scoped, tag = 'scratch operand']
  %s0 = inlined_call_operand.hbm [shape: f32[2,32], index: 0, kind: input, shape index: {}]
  %s1 = inlined_call_operand.hbm [shape: f32[2,8,32], index: 1, kind: input, shape index: {}]
  %s2 = inlined_call_operand.hbm [shape: f32[32,32], index: 2, kind: input, shape index: {}]
  %s3 = inlined_call_operand.hbm [shape: f32[32,32], index: 3, kind: input, shape index: {}]
  %s4 = inlined_call_operand.hbm [shape: f32[32,32], index: 4, kind: input, shape index: {}]
  %s5 = inlined_call_operand.hbm [shape: f32[2,32], index: 5, kind: output, shape index: {}]
  %s6 = sld [smem:[#allocation0]]
  $region58: #{tpu_custom_call.1} parent=0
    _
  %s8 = ssub.s32 1, %s6
  %s9 = scalar_select 0, %s8, %s6
  $region1: #{tpu_custom_call.1} parent=0
    #allocation6 [shape = 'u8[1024]{0}', space=vmem, size = 0x400, scoped, tag = 'input window, operand 0, single buffered']
    #allocation7 [shape = 's32[1]{0}', space=sflag, size = 0x4, scoped, tag = 'scoped memory for tpu_custom_call.1']
    #allocation8 [shape = 's32[1]{0}', space=sflag, size = 0x4, scoped, tag = 'scoped memory for tpu_custom_call.1']
    #allocation9 [shape = 'u8[8192]{0}', space=vmem, size = 0x2000, scoped, tag = 'input window, operand 1, single buffered']
    #allocation10 [shape = 's32[1]{0}', space=sflag, size = 0x4, scoped, tag = 'scoped memory for tpu_custom_call.1']
    #allocation11 [shape = 'u8[16384]{0}', space=vmem, size = 0x4000, scoped, tag = 'input window, operand 2, single buffered']
    #allocation12 [shape = 'u8[16384]{0}', space=vmem, size = 0x4000, scoped, tag = 'input window, operand 3, single buffered']
    #allocation13 [shape = 's32[1]{0}', space=sflag, size = 0x4, scoped, tag = 'scoped memory for tpu_custom_call.1']
    #allocation14 [shape = 'u8[16384]{0}', space=vmem, size = 0x4000, scoped, tag = 'input window, operand 4, single buffered']
    #allocation15 [shape = 'u8[1024]{0}', space=vmem, size = 0x400, scoped, tag = 'output window, operand 0, single buffered']
    %10 = vsyncpa [#allocation7], 0
    %11 = vsyncpa [#allocation10], 0
    %12 = vsyncpa [#allocation13], 0
    %13 = vsyncpa [#allocation8], 0
    // Predicated region
    $region2: #{tpu_custom_call.1} parent=1 // pred_check
      _
    $region3: #{tpu_custom_call.1} parent=1 // pred_check_branch
      %15 = sbr.rel (0) target = $region5
    $region4: #{tpu_custom_call.1} parent=1 // pred_region
      %s17 = ssub.s32 32, 32
      %18 = vsyncadd [#allocation7], %s17
      %s20 = sshll.u32 [#allocation6], 4
      %s21 = int_to_ptr.vmem [resolvable:$true] %s20
      %23 = dma.hbm_to_vmem [thread:$0]  %s0, 32, %s21, [#allocation7]
    $region5: #{tpu_custom_call.1} parent=1 // pred_fallthru
      _
    // Predicated region
    $region6: #{tpu_custom_call.1} parent=1 // pred_check
      _
    $region7: #{tpu_custom_call.1} parent=1 // pred_check_branch
      %25 = sbr.rel (0) target = $region9
    $region8: #{tpu_custom_call.1} parent=1 // pred_region
      %s27 = ssub.s32 256, 256
      %28 = vsyncadd [#allocation10], %s27
      %s29 = sshll.u32 [#allocation9], 4
      %s30 = int_to_ptr.vmem [resolvable:$true] %s29
      %35 = dma.hbm_to_vmem [thread:$0]  %s1, 256, %s30, [#allocation10], 128, 128, 8
    $region9: #{tpu_custom_call.1} parent=1 // pred_fallthru
      _
    // Predicated region
    $region10: #{tpu_custom_call.1} parent=1 // pred_check
      _
    $region11: #{tpu_custom_call.1} parent=1 // pred_check_branch
      %37 = sbr.rel (0) target = $region13
    $region12: #{tpu_custom_call.1} parent=1 // pred_region
      %s39 = ssub.s32 512, 512
      %40 = vsyncadd [#allocation10], %s39
      %s41 = sshll.u32 [#allocation11], 4
      %s42 = int_to_ptr.vmem [resolvable:$true] %s41
      %47 = dma.hbm_to_vmem [thread:$0]  %s2, 512, %s42, [#allocation10], 128, 128, 8
    $region13: #{tpu_custom_call.1} parent=1 // pred_fallthru
      _
    // Predicated region
    $region14: #{tpu_custom_call.1} parent=1 // pred_check
      _
    $region15: #{tpu_custom_call.1} parent=1 // pred_check_branch
      %49 = sbr.rel (0) target = $region17
    $region16: #{tpu_custom_call.1} parent=1 // pred_region
      %s51 = ssub.s32 512, 512
      %52 = vsyncadd [#allocation13], %s51
      %s53 = sshll.u32 [#allocation12], 4
      %s54 = int_to_ptr.vmem [resolvable:$true] %s53
      %59 = dma.hbm_to_vmem [thread:$0]  %s3, 512, %s54, [#allocation13], 128, 128, 8
    $region17: #{tpu_custom_call.1} parent=1 // pred_fallthru
      _
    // Predicated region
    $region18: #{tpu_custom_call.1} parent=1 // pred_check
      _
    $region19: #{tpu_custom_call.1} parent=1 // pred_check_branch
      %61 = sbr.rel (0) target = $region21
    $region20: #{tpu_custom_call.1} parent=1 // pred_region
      %s63 = ssub.s32 512, 512
      %64 = vsyncadd [#allocation13], %s63
      %s65 = sshll.u32 [#allocation14], 4
      %s66 = int_to_ptr.vmem [resolvable:$true] %s65
      %71 = dma.hbm_to_vmem [thread:$0]  %s4, 512, %s66, [#allocation13], 128, 128, 8
    $region21: #{tpu_custom_call.1} parent=1 // pred_fallthru
      _
    // Predicated region
    $region22: #{tpu_custom_call.1} parent=1 // pred_check
      _
    $region23: #{tpu_custom_call.1} parent=1 // pred_check_branch
      %73 = sbr.rel (0) target = $region25
    $region24: #{tpu_custom_call.1} parent=1 // pred_region
      %74 = dma.done [#allocation7], 32
    $region25: #{tpu_custom_call.1} parent=1 // pred_fallthru
      _
    // Predicated region
    $region26: #{tpu_custom_call.1} parent=1 // pred_check
      _
    $region27: #{tpu_custom_call.1} parent=1 // pred_check_branch
      %76 = sbr.rel (0) target = $region29
    $region28: #{tpu_custom_call.1} parent=1 // pred_region
      %77 = dma.done [#allocation10], 256
    $region29: #{tpu_custom_call.1} parent=1 // pred_fallthru
      _
    // Predicated region
    $region30: #{tpu_custom_call.1} parent=1 // pred_check
      _
    $region31: #{tpu_custom_call.1} parent=1 // pred_check_branch
      %79 = sbr.rel (0) target = $region33
    $region32: #{tpu_custom_call.1} parent=1 // pred_region
      %80 = dma.done [#allocation10], 512
    $region33: #{tpu_custom_call.1} parent=1 // pred_fallthru
      _
    // Predicated region
    $region34: #{tpu_custom_call.1} parent=1 // pred_check
      _
    $region35: #{tpu_custom_call.1} parent=1 // pred_check_branch
      %82 = sbr.rel (0) target = $region37
    $region36: #{tpu_custom_call.1} parent=1 // pred_region
      %83 = dma.done [#allocation13], 512
    $region37: #{tpu_custom_call.1} parent=1 // pred_fallthru
      _
    // Predicated region
    $region38: #{tpu_custom_call.1} parent=1 // pred_check
      _
    $region39: #{tpu_custom_call.1} parent=1 // pred_check_branch
      %85 = sbr.rel (0) target = $region41
    $region40: #{tpu_custom_call.1} parent=1 // pred_region
      %86 = dma.done [#allocation13], 512
    $region41: #{tpu_custom_call.1} parent=1 // pred_fallthru
      _
    %p87 = scmp.eq.s32.totalorder 0, 0
    // Predicated region
    $region42: #{tpu_custom_call.1} parent=1 // pred_check
      %p88 = pneg %p87
    $region43: #{tpu_custom_call.1} parent=1 // pred_check_branch
      %90 = sbr.rel (%p88) target = $region45
    $region44: #{tpu_custom_call.1} parent=1 // pred_region
      %v91 = vld [vmem:[#allocation6] sm:$0x3]
      %v92 = vld [vmem:[#allocation11] sm:$0xff]
      %v93 = vld [vmem:[#allocation11 + $0x8] sm:$0xff]
      %v94 = vld [vmem:[#allocation11 + $0x10] sm:$0xff]
      %v95 = vld [vmem:[#allocation11 + $0x18] sm:$0xff]
      %vm96 = vcmask 261120
      %v98 = vsel %vm96, %v91, 0
      %100 = vmatprep.subr.mxu0 0.0
      %v101 = vand.u32 %v92, 4294901760
      %102 = vmatpush1.msra.mxu0 %v101
      %103 = vmatprep.subr.mxu0 0.0
      %v104 = vand.u32 %v93, 4294901760
      %105 = vmatpush1.msra.mxu0 %v104
      %106 = vmatprep.subr.mxu0 0.0
      %v107 = vand.u32 %v94, 4294901760
      %108 = vmatpush1.msra.mxu0 %v107
      %109 = vmatprep.subr.mxu0 0.0
      %v110 = vand.u32 %v95, 4294901760
      %111 = vmatpush1.msra.mxu0 %v110
      %112 = vmatprep.subr.mxu0 0.0
      %113 = vmatpush1.msra.mxu0 0.0
      %114 = vmatprep.subr.mxu0 0.0
      %115 = vmatpush1.msra.mxu0 0.0
      %116 = vmatprep.subr.mxu0 0.0
      %117 = vmatpush1.msra.mxu0 0.0
      %118 = vmatprep.subr.mxu0 0.0
      %119 = vmatpush1.msra.mxu0 0.0
      %120 = vmatprep.subr.mxu0 0.0
      %121 = vmatpush1.msra.mxu0 0.0
      %122 = vmatprep.subr.mxu0 0.0
      %123 = vmatpush1.msra.mxu0 0.0
      %124 = vmatprep.subr.mxu0 0.0
      %125 = vmatpush1.msra.mxu0 0.0
      %126 = vmatprep.subr.mxu0 0.0
      %127 = vmatpush1.msra.mxu0 0.0
      %128 = vmatprep.subr.mxu0 0.0
      %129 = vmatpush1.msra.mxu0 0.0
      %130 = vmatprep.subr.mxu0 0.0
      %131 = vmatpush1.msra.mxu0 0.0
      %132 = vmatprep.subr.mxu0 0.0
      %133 = vmatpush1.msra.mxu0 0.0
      %134 = vmatprep.subr.mxu0 0.0
      %135 = vmatpush1.msra.mxu0 0.0
      %136 = vmatprep.subr.mxu0 0.0
      %137 = vmatpush1.msra.mxu0 0.0
      %138 = vmatprep.subr.mxu0 0.0
      %139 = vmatpush1.msra.mxu0 0.0
      %140 = vmatprep.subr.mxu0 0.0
      %141 = vmatpush1.msra.mxu0 0.0
      %142 = vmatprep.subr.mxu0 0.0
      %143 = vmatpush1.msra.mxu0 0.0
      %144 = vmatprep.subr.mxu0 0.0
      %145 = vmatpush1.msra.mxu0 0.0
      %146 = vmatprep.subr.mxu0 0.0
      %147 = vmatpush1.msra.mxu0 0.0
      %148 = vmatprep.subr.mxu0 0.0
      %149 = vmatpush1.msra.mxu0 0.0
      %150 = vmatprep.subr.mxu0 0.0
      %151 = vmatpush1.msra.mxu0 0.0
      %152 = vmatprep.subr.mxu0 0.0
      %153 = vmatpush1.msra.mxu0 0.0
      %154 = vmatprep.subr.mxu0 0.0
      %155 = vmatpush1.msra.mxu0 0.0
      %156 = vmatprep.subr.mxu0 0.0
      %157 = vmatpush1.msra.mxu0 0.0
      %158 = vmatprep.subr.mxu0 0.0
      %159 = vmatpush1.msra.mxu0 0.0
      %160 = vmatprep.subr.mxu0 0.0
      %161 = vmatpush1.msra.mxu0 0.0
      %162 = vmatprep.subr.mxu0 0.0
      %163 = vmatpush1.msra.mxu0 0.0
      %164 = vmatprep.subr.mxu0 0.0
      %165 = vmatpush1.msra.mxu0 0.0
      %166 = vmatprep.subr.mxu0 0.0
      %167 = vmatpush1.msra.mxu0 0.0
      %168 = vmatprep.mubr.f32.mxu0 0.0
      %v169 = vand.u32 %v98, 4294901760
      %v170 = vsub.f32 %v98, %v169
      %v171 = vand.u32 %v170, 4294901760
      %v172 = vsub.f32 %v170, %v171
      %v173 = vand.u32 %v172, 4294901760
      %174 = vmatmul.mubr.f32.gmra.mrb[0].mxu0 %v173
      %v175 = vpop.f32.mrb[0].mxu0
      %v176 = vadd.f32 0.0, %v175
      %v177 = vpop.f32.mrb[0].mxu0
      %178 = vdwg.mxu0
      %179 = vmatprep.subr.mxu0 0.0
      %v180 = vand.u32 %v92, 4294901760
      %v181 = vsub.f32 %v92, %v180
      %v182 = vand.u32 %v181, 4294901760
      %v183 = vsub.f32 %v181, %v182
      %v184 = vand.u32 %v183, 4294901760
      %185 = vmatpush1.msra.mxu0 %v184
      %186 = vmatprep.subr.mxu0 0.0
      %v187 = vand.u32 %v93, 4294901760
      %v188 = vsub.f32 %v93, %v187
      %v189 = vand.u32 %v188, 4294901760
      %v190 = vsub.f32 %v188, %v189
      %v191 = vand.u32 %v190, 4294901760
      %192 = vmatpush1.msra.mxu0 %v191
      %193 = vmatprep.subr.mxu0 0.0
      %v194 = vand.u32 %v94, 4294901760
      %v195 = vsub.f32 %v94, %v194
      %v196 = vand.u32 %v195, 4294901760
      %v197 = vsub.f32 %v195, %v196
      %v198 = vand.u32 %v197, 4294901760
      %199 = vmatpush1.msra.mxu0 %v198
      %200 = vmatprep.subr.mxu0 0.0
      %v201 = vand.u32 %v95, 4294901760
      %v202 = vsub.f32 %v95, %v201
      %v203 = vand.u32 %v202, 4294901760
      %v204 = vsub.f32 %v202, %v203
      %v205 = vand.u32 %v204, 4294901760
      %206 = vmatpush1.msra.mxu0 %v205
      %207 = vmatprep.subr.mxu0 0.0
      %208 = vmatpush1.msra.mxu0 0.0
      %209 = vmatprep.subr.mxu0 0.0
      %210 = vmatpush1.msra.mxu0 0.0
      %211 = vmatprep.subr.mxu0 0.0
      %212 = vmatpush1.msra.mxu0 0.0
      %213 = vmatprep.subr.mxu0 0.0
      %214 = vmatpush1.msra.mxu0 0.0
      %215 = vmatprep.subr.mxu0 0.0
      %216 = vmatpush1.msra.mxu0 0.0
      %217 = vmatprep.subr.mxu0 0.0
      %218 = vmatpush1.msra.mxu0 0.0
      %219 = vmatprep.subr.mxu0 0.0
      %220 = vmatpush1.msra.mxu0 0.0
      %221 = vmatprep.subr.mxu0 0.0
      %222 = vmatpush1.msra.mxu0 0.0
      %223 = vmatprep.subr.mxu0 0.0
      %224 = vmatpush1.msra.mxu0 0.0
      %225 = vmatprep.subr.mxu0 0.0
      %226 = vmatpush1.msra.mxu0 0.0
      %227 = vmatprep.subr.mxu0 0.0
      %228 = vmatpush1.msra.mxu0 0.0
      %229 = vmatprep.subr.mxu0 0.0
      %230 = vmatpush1.msra.mxu0 0.0
      %231 = vmatprep.subr.mxu0 0.0
      %232 = vmatpush1.msra.mxu0 0.0
      %233 = vmatprep.subr.mxu0 0.0
      %234 = vmatpush1.msra.mxu0 0.0
      %235 = vmatprep.subr.mxu0 0.0
      %236 = vmatpush1.msra.mxu0 0.0
      %237 = vmatprep.subr.mxu0 0.0
      %238 = vmatpush1.msra.mxu0 0.0
      %239 = vmatprep.subr.mxu0 0.0
      %240 = vmatpush1.msra.mxu0 0.0
      %241 = vmatprep.subr.mxu0 0.0
      %242 = vmatpush1.msra.mxu0 0.0
      %243 = vmatprep.subr.mxu0 0.0
      %244 = vmatpush1.msra.mxu0 0.0
      %245 = vmatprep.subr.mxu0 0.0
      %246 = vmatpush1.msra.mxu0 0.0
      %247 = vmatprep.subr.mxu0 0.0
      %248 = vmatpush1.msra.mxu0 0.0
      %249 = vmatprep.subr.mxu0 0.0
      %250 = vmatpush1.msra.mxu0 0.0
      %251 = vmatprep.subr.mxu0 0.0
      %252 = vmatpush1.msra.mxu0 0.0
      %253 = vmatprep.subr.mxu0 0.0
      %254 = vmatpush1.msra.mxu0 0.0
      %255 = vmatprep.subr.mxu0 0.0
      %256 = vmatpush1.msra.mxu0 0.0
      %257 = vmatprep.subr.mxu0 0.0
      %258 = vmatpush1.msra.mxu0 0.0
      %259 = vmatprep.subr.mxu0 0.0
      %260 = vmatpush1.msra.mxu0 0.0
      %261 = vmatprep.subr.mxu0 0.0
      %262 = vmatpush1.msra.mxu0 0.0
      %263 = vmatprep.mubr.f32.mxu0 0.0
      %v264 = vand.u32 %v98, 4294901760
      %265 = vmatmul.mubr.f32.gmra.mrb[0].mxu0 %v264
      %v266 = vpop.f32.mrb[0].mxu0
      %v267 = vadd.f32 %v176, %v266
      %v268 = vpop.f32.mrb[0].mxu0
      %269 = vdwg.mxu0
      %270 = vmatprep.subr.mxu0 0.0
      %v271 = vand.u32 %v92, 4294901760
      %v272 = vsub.f32 %v92, %v271
      %273 = vmatpush1.msra.mxu0 %v272
      %274 = vmatprep.subr.mxu0 0.0
      %v275 = vand.u32 %v93, 4294901760
      %v276 = vsub.f32 %v93, %v275
      %277 = vmatpush1.msra.mxu0 %v276
      %278 = vmatprep.subr.mxu0 0.0
      %v279 = vand.u32 %v94, 4294901760
      %v280 = vsub.f32 %v94, %v279
      %281 = vmatpush1.msra.mxu0 %v280
      %282 = vmatprep.subr.mxu0 0.0
      %v283 = vand.u32 %v95, 4294901760
      %v284 = vsub.f32 %v95, %v283
      %285 = vmatpush1.msra.mxu0 %v284
      %286 = vmatprep.subr.mxu0 0.0
      %287 = vmatpush1.msra.mxu0 0.0
      %288 = vmatprep.subr.mxu0 0.0
      %289 = vmatpush1.msra.mxu0 0.0
      %290 = vmatprep.subr.mxu0 0.0
      %291 = vmatpush1.msra.mxu0 0.0
      %292 = vmatprep.subr.mxu0 0.0
      %293 = vmatpush1.msra.mxu0 0.0
      %294 = vmatprep.subr.mxu0 0.0
      %295 = vmatpush1.msra.mxu0 0.0
      %296 = vmatprep.subr.mxu0 0.0
      %297 = vmatpush1.msra.mxu0 0.0
      %298 = vmatprep.subr.mxu0 0.0
      %299 = vmatpush1.msra.mxu0 0.0
      %300 = vmatprep.subr.mxu0 0.0
      %301 = vmatpush1.msra.mxu0 0.0
      %302 = vmatprep.subr.mxu0 0.0
      %303 = vmatpush1.msra.mxu0 0.0
      %304 = vmatprep.subr.mxu0 0.0
      %305 = vmatpush1.msra.mxu0 0.0
      %306 = vmatprep.subr.mxu0 0.0
      %307 = vmatpush1.msra.mxu0 0.0
      %308 = vmatprep.subr.mxu0 0.0
      %309 = vmatpush1.msra.mxu0 0.0
      %310 = vmatprep.subr.mxu0 0.0
      %311 = vmatpush1.msra.mxu0 0.0
      %312 = vmatprep.subr.mxu0 0.0
      %313 = vmatpush1.msra.mxu0 0.0
      %314 = vmatprep.subr.mxu0 0.0
      %315 = vmatpush1.msra.mxu0 0.0
      %316 = vmatprep.subr.mxu0 0.0
      %317 = vmatpush1.msra.mxu0 0.0
      %318 = vmatprep.subr.mxu0 0.0
      %319 = vmatpush1.msra.mxu0 0.0
      %320 = vmatprep.subr.mxu0 0.0
      %321 = vmatpush1.msra.mxu0 0.0
      %322 = vmatprep.subr.mxu0 0.0
      %323 = vmatpush1.msra.mxu0 0.0
      %324 = vmatprep.subr.mxu0 0.0
      %325 = vmatpush1.msra.mxu0 0.0
      %326 = vmatprep.subr.mxu0 0.0
      %327 = vmatpush1.msra.mxu0 0.0
      %328 = vmatprep.subr.mxu0 0.0
      %329 = vmatpush1.msra.mxu0 0.0
      %330 = vmatprep.subr.mxu0 0.0
      %331 = vmatpush1.msra.mxu0 0.0
      %332 = vmatprep.subr.mxu0 0.0
      %333 = vmatpush1.msra.mxu0 0.0
      %334 = vmatprep.subr.mxu0 0.0
      %335 = vmatpush1.msra.mxu0 0.0
      %336 = vmatprep.subr.mxu0 0.0
      %337 = vmatpush1.msra.mxu0 0.0
      %338 = vmatprep.subr.mxu0 0.0
      %339 = vmatpush1.msra.mxu0 0.0
      %340 = vmatprep.subr.mxu0 0.0
      %341 = vmatpush1.msra.mxu0 0.0
      %342 = vmatprep.mubr.f32.mxu0 0.0
      %v343 = vand.u32 %v98, 4294901760
      %v344 = vsub.f32 %v98, %v343
      %345 = vmatmul.mubr.f32.gmra.mrb[0].mxu0 %v344
      %v346 = vpop.f32.mrb[0].mxu0
      %v347 = vadd.f32 %v267, %v346
      %v348 = vpop.f32.mrb[0].mxu0
      %349 = vdwg.mxu0
      %350 = vmatprep.subr.mxu0 0.0
      %v351 = vand.u32 %v92, 4294901760
      %352 = vmatpush1.msra.mxu0 %v351
      %353 = vmatprep.subr.mxu0 0.0
      %v354 = vand.u32 %v93, 4294901760
      %355 = vmatpush1.msra.mxu0 %v354
      %356 = vmatprep.subr.mxu0 0.0
      %v357 = vand.u32 %v94, 4294901760
      %358 = vmatpush1.msra.mxu0 %v357
      %359 = vmatprep.subr.mxu0 0.0
      %v360 = vand.u32 %v95, 4294901760
      %361 = vmatpush1.msra.mxu0 %v360
      %362 = vmatprep.subr.mxu0 0.0
      %363 = vmatpush1.msra.mxu0 0.0
      %364 = vmatprep.subr.mxu0 0.0
      %365 = vmatpush1.msra.mxu0 0.0
      %366 = vmatprep.subr.mxu0 0.0
      %367 = vmatpush1.msra.mxu0 0.0
      %368 = vmatprep.subr.mxu0 0.0
      %369 = vmatpush1.msra.mxu0 0.0
      %370 = vmatprep.subr.mxu0 0.0
      %371 = vmatpush1.msra.mxu0 0.0
      %372 = vmatprep.subr.mxu0 0.0
      %373 = vmatpush1.msra.mxu0 0.0
      %374 = vmatprep.subr.mxu0 0.0
      %375 = vmatpush1.msra.mxu0 0.0
      %376 = vmatprep.subr.mxu0 0.0
      %377 = vmatpush1.msra.mxu0 0.0
      %378 = vmatprep.subr.mxu0 0.0
      %379 = vmatpush1.msra.mxu0 0.0
      %380 = vmatprep.subr.mxu0 0.0
      %381 = vmatpush1.msra.mxu0 0.0
      %382 = vmatprep.subr.mxu0 0.0
      %383 = vmatpush1.msra.mxu0 0.0
      %384 = vmatprep.subr.mxu0 0.0
      %385 = vmatpush1.msra.mxu0 0.0
      %386 = vmatprep.subr.mxu0 0.0
      %387 = vmatpush1.msra.mxu0 0.0
      %388 = vmatprep.subr.mxu0 0.0
      %389 = vmatpush1.msra.mxu0 0.0
      %390 = vmatprep.subr.mxu0 0.0
      %391 = vmatpush1.msra.mxu0 0.0
      %392 = vmatprep.subr.mxu0 0.0
      %393 = vmatpush1.msra.mxu0 0.0
      %394 = vmatprep.subr.mxu0 0.0
      %395 = vmatpush1.msra.mxu0 0.0
      %396 = vmatprep.subr.mxu0 0.0
      %397 = vmatpush1.msra.mxu0 0.0
      %398 = vmatprep.subr.mxu0 0.0
      %399 = vmatpush1.msra.mxu0 0.0
      %400 = vmatprep.subr.mxu0 0.0
      %401 = vmatpush1.msra.mxu0 0.0
      %402 = vmatprep.subr.mxu0 0.0
      %403 = vmatpush1.msra.mxu0 0.0
      %404 = vmatprep.subr.mxu0 0.0
      %405 = vmatpush1.msra.mxu0 0.0
      %406 = vmatprep.subr.mxu0 0.0
      %407 = vmatpush1.msra.mxu0 0.0
      %408 = vmatprep.subr.mxu0 0.0
      %409 = vmatpush1.msra.mxu0 0.0
      %410 = vmatprep.subr.mxu0 0.0
      %411 = vmatpush1.msra.mxu0 0.0
      %412 = vmatprep.subr.mxu0 0.0
      %413 = vmatpush1.msra.mxu0 0.0
      %414 = vmatprep.subr.mxu0 0.0
      %415 = vmatpush1.msra.mxu0 0.0
      %416 = vmatprep.subr.mxu0 0.0
      %417 = vmatpush1.msra.mxu0 0.0
      %418 = vmatprep.mubr.f32.mxu0 0.0
      %v419 = vand.u32 %v98, 4294901760
      %v420 = vsub.f32 %v98, %v419
      %v421 = vand.u32 %v420, 4294901760
      %422 = vmatmul.mubr.f32.gmra.mrb[0].mxu0 %v421
      %v423 = vpop.f32.mrb[0].mxu0
      %v424 = vadd.f32 %v347, %v423
      %v425 = vpop.f32.mrb[0].mxu0
      %426 = vdwg.mxu0
      %427 = vmatprep.subr.mxu0 0.0
      %v428 = vand.u32 %v92, 4294901760
      %v429 = vsub.f32 %v92, %v428
      %v430 = vand.u32 %v429, 4294901760
      %431 = vmatpush1.msra.mxu0 %v430
      %432 = vmatprep.subr.mxu0 0.0
      %v433 = vand.u32 %v93, 4294901760
      %v434 = vsub.f32 %v93, %v433
      %v435 = vand.u32 %v434, 4294901760
      %436 = vmatpush1.msra.mxu0 %v435
      %437 = vmatprep.subr.mxu0 0.0
      %v438 = vand.u32 %v94, 4294901760
      %v439 = vsub.f32 %v94, %v438
      %v440 = vand.u32 %v439, 4294901760
      %441 = vmatpush1.msra.mxu0 %v440
      %442 = vmatprep.subr.mxu0 0.0
      %v443 = vand.u32 %v95, 4294901760
      %v444 = vsub.f32 %v95, %v443
      %v445 = vand.u32 %v444, 4294901760
      %446 = vmatpush1.msra.mxu0 %v445
      %447 = vmatprep.subr.mxu0 0.0
      %448 = vmatpush1.msra.mxu0 0.0
      %449 = vmatprep.subr.mxu0 0.0
      %450 = vmatpush1.msra.mxu0 0.0
      %451 = vmatprep.subr.mxu0 0.0
      %452 = vmatpush1.msra.mxu0 0.0
      %453 = vmatprep.subr.mxu0 0.0
      %454 = vmatpush1.msra.mxu0 0.0
      %455 = vmatprep.subr.mxu0 0.0
      %456 = vmatpush1.msra.mxu0 0.0
      %457 = vmatprep.subr.mxu0 0.0
      %458 = vmatpush1.msra.mxu0 0.0
      %459 = vmatprep.subr.mxu0 0.0
      %460 = vmatpush1.msra.mxu0 0.0
      %461 = vmatprep.subr.mxu0 0.0
      %462 = vmatpush1.msra.mxu0 0.0
      %463 = vmatprep.subr.mxu0 0.0
      %464 = vmatpush1.msra.mxu0 0.0
      %465 = vmatprep.subr.mxu0 0.0
      %466 = vmatpush1.msra.mxu0 0.0
      %467 = vmatprep.subr.mxu0 0.0
      %468 = vmatpush1.msra.mxu0 0.0
      %469 = vmatprep.subr.mxu0 0.0
      %470 = vmatpush1.msra.mxu0 0.0
      %471 = vmatprep.subr.mxu0 0.0
      %472 = vmatpush1.msra.mxu0 0.0
      %473 = vmatprep.subr.mxu0 0.0
      %474 = vmatpush1.msra.mxu0 0.0
      %475 = vmatprep.subr.mxu0 0.0
      %476 = vmatpush1.msra.mxu0 0.0
      %477 = vmatprep.subr.mxu0 0.0
      %478 = vmatpush1.msra.mxu0 0.0
      %479 = vmatprep.subr.mxu0 0.0
      %480 = vmatpush1.msra.mxu0 0.0
      %481 = vmatprep.subr.mxu0 0.0
      %482 = vmatpush1.msra.mxu0 0.0
      %483 = vmatprep.subr.mxu0 0.0
      %484 = vmatpush1.msra.mxu0 0.0
      %485 = vmatprep.subr.mxu0 0.0
      %486 = vmatpush1.msra.mxu0 0.0
      %487 = vmatprep.subr.mxu0 0.0
      %488 = vmatpush1.msra.mxu0 0.0
      %489 = vmatprep.subr.mxu0 0.0
      %490 = vmatpush1.msra.mxu0 0.0
      %491 = vmatprep.subr.mxu0 0.0
      %492 = vmatpush1.msra.mxu0 0.0
      %493 = vmatprep.subr.mxu0 0.0
      %494 = vmatpush1.msra.mxu0 0.0
      %495 = vmatprep.subr.mxu0 0.0
      %496 = vmatpush1.msra.mxu0 0.0
      %497 = vmatprep.subr.mxu0 0.0
      %498 = vmatpush1.msra.mxu0 0.0
      %499 = vmatprep.subr.mxu0 0.0
      %500 = vmatpush1.msra.mxu0 0.0
      %501 = vmatprep.subr.mxu0 0.0
      %502 = vmatpush1.msra.mxu0 0.0
      %503 = vmatprep.mubr.f32.mxu0 0.0
      %v504 = vand.u32 %v98, 4294901760
      %505 = vmatmul.mubr.f32.gmra.mrb[0].mxu0 %v504
      %v506 = vpop.f32.mrb[0].mxu0
      %v507 = vadd.f32 %v424, %v506
      %v508 = vpop.f32.mrb[0].mxu0
      %509 = vdwg.mxu0
      %510 = vmatprep.subr.mxu0 0.0
      %v511 = vand.u32 %v92, 4294901760
      %512 = vmatpush1.msra.mxu0 %v511
      %513 = vmatprep.subr.mxu0 0.0
      %v514 = vand.u32 %v93, 4294901760
      %515 = vmatpush1.msra.mxu0 %v514
      %516 = vmatprep.subr.mxu0 0.0
      %v517 = vand.u32 %v94, 4294901760
      %518 = vmatpush1.msra.mxu0 %v517
      %519 = vmatprep.subr.mxu0 0.0
      %v520 = vand.u32 %v95, 4294901760
      %521 = vmatpush1.msra.mxu0 %v520
      %522 = vmatprep.subr.mxu0 0.0
      %523 = vmatpush1.msra.mxu0 0.0
      %524 = vmatprep.subr.mxu0 0.0
      %525 = vmatpush1.msra.mxu0 0.0
      %526 = vmatprep.subr.mxu0 0.0
      %527 = vmatpush1.msra.mxu0 0.0
      %528 = vmatprep.subr.mxu0 0.0
      %529 = vmatpush1.msra.mxu0 0.0
      %530 = vmatprep.subr.mxu0 0.0
      %531 = vmatpush1.msra.mxu0 0.0
      %532 = vmatprep.subr.mxu0 0.0
      %533 = vmatpush1.msra.mxu0 0.0
      %534 = vmatprep.subr.mxu0 0.0
      %535 = vmatpush1.msra.mxu0 0.0
      %536 = vmatprep.subr.mxu0 0.0
      %537 = vmatpush1.msra.mxu0 0.0
      %538 = vmatprep.subr.mxu0 0.0
      %539 = vmatpush1.msra.mxu0 0.0
      %540 = vmatprep.subr.mxu0 0.0
      %541 = vmatpush1.msra.mxu0 0.0
      %542 = vmatprep.subr.mxu0 0.0
      %543 = vmatpush1.msra.mxu0 0.0
      %544 = vmatprep.subr.mxu0 0.0
      %545 = vmatpush1.msra.mxu0 0.0
      %546 = vmatprep.subr.mxu0 0.0
      %547 = vmatpush1.msra.mxu0 0.0
      %548 = vmatprep.subr.mxu0 0.0
      %549 = vmatpush1.msra.mxu0 0.0
      %550 = vmatprep.subr.mxu0 0.0
      %551 = vmatpush1.msra.mxu0 0.0
      %552 = vmatprep.subr.mxu0 0.0
      %553 = vmatpush1.msra.mxu0 0.0
      %554 = vmatprep.subr.mxu0 0.0
      %555 = vmatpush1.msra.mxu0 0.0
      %556 = vmatprep.subr.mxu0 0.0
      %557 = vmatpush1.msra.mxu0 0.0
      %558 = vmatprep.subr.mxu0 0.0
      %559 = vmatpush1.msra.mxu0 0.0
      %560 = vmatprep.subr.mxu0 0.0
      %561 = vmatpush1.msra.mxu0 0.0
      %562 = vmatprep.subr.mxu0 0.0
      %563 = vmatpush1.msra.mxu0 0.0
      %564 = vmatprep.subr.mxu0 0.0
      %565 = vmatpush1.msra.mxu0 0.0
      %566 = vmatprep.subr.mxu0 0.0
      %567 = vmatpush1.msra.mxu0 0.0
      %568 = vmatprep.subr.mxu0 0.0
      %569 = vmatpush1.msra.mxu0 0.0
      %570 = vmatprep.subr.mxu0 0.0
      %571 = vmatpush1.msra.mxu0 0.0
      %572 = vmatprep.subr.mxu0 0.0
      %573 = vmatpush1.msra.mxu0 0.0
      %574 = vmatprep.subr.mxu0 0.0
      %575 = vmatpush1.msra.mxu0 0.0
      %576 = vmatprep.subr.mxu0 0.0
      %577 = vmatpush1.msra.mxu0 0.0
      %578 = vmatprep.mubr.f32.mxu0 0.0
      %v579 = vand.u32 %v98, 4294901760
      %580 = vmatmul.mubr.f32.gmra.mrb[0].mxu0 %v579
      %v581 = vpop.f32.mrb[0].mxu0
      %v582 = vadd.f32 %v507, %v581
      %v583 = vpop.f32.mrb[0].mxu0
      %584 = vdwg.mxu0
      %vm585 = vcmask 254976
      %586 = vst.msk [vmem:[#allocation2] sm:$0x3] %vm585, %v582
      %vm587 = vcmask 1024
      %588 = vst.msk [vmem:[#allocation3] sm:$0x3] %vm587, -inf
      %589 = vst.msk [vmem:[#allocation4] sm:$0x3] %vm587, 0.0
      %590 = vst.msk [vmem:[#allocation5] sm:$0x3] %vm585, 0.0
    $region45: #{tpu_custom_call.1} parent=1 // pred_fallthru
      _
    %v591 = vld [vmem:[#allocation9] sm:$0xff]
    %v592 = vld [vmem:[#allocation9 + $0x8] sm:$0xff]
    %v593 = vld [vmem:[#allocation2] sm:$0x3]
    %v596 = vunpack.c.l.s4 1966171168
    %v597 = vunpack.c.0.s8 %v596
    %v598 = vlaneseq
    %v599 = vshrl.u32 %v598, 7
    %v600 = vsub.s32 %v597, %v599
    %v601 = vrot.slane %v593, %v600
    %v602 = vcombine.high %v601, %v601
    %v604 = vunpack.c.l.s4 1966171168
    %v605 = vunpack.c.0.s8 %v604
    %v606 = vlaneseq
    %v607 = vshrl.u32 %v606, 7
    %v608 = vsub.s32 %v605, %v607
    %v609 = vrot.slane %v601, %v608
    %v611 = vunpack.c.l.s4 1966171168
    %v612 = vunpack.c.0.s8 %v611
    %v613 = vlaneseq
    %v614 = vshrl.u32 %v613, 7
    %v615 = vsub.s32 %v612, %v614
    %v616 = vrot.slane %v602, %v615
    %v617 = vlaneseq
    %v618 = vshrl.u32 %v617, 7
    %v619 = vsub.s32 0, %v618
    %v620 = vrot.slane %v609, %v619
    %v621 = vlaneseq
    %v622 = vshrl.u32 %v621, 7
    %v623 = vsub.s32 0, %v622
    %v624 = vrot.slane %v616, %v623
    %v627 = vmul.f32 %v591, %v620
    %v628 = vmul.f32 %v592, %v624
    %vm629 = vcmask 261120
    %v630 = vsel %vm629, %v627, 0.0
    %631 = vadd.xlane.f32.xlu0 %v630
    %v632 = vpop.xlane.xlu0 %631
    %v633 = vsel %vm629, %v628, 0.0
    %634 = vadd.xlane.f32.xlu0 %v633
    %v635 = vpop.xlane.xlu0 %634
    %v636 = vld [vmem:[#allocation3] sm:$0x3]
    %v639 = vlaneseq
    %v640 = vand.u32 %v639, 127
    %v641 = vlaneseq
    %v642 = vshrl.u32 %v641, 7
    %v643 = vsub.s32 %v640, %v642
    %v644 = vrot.slane %v632, %v643
    %v645 = vlaneseq
    %v646 = vshrl.u32 %v645, 7
    %v647 = vsub.s32 %v640, %v646
    %v648 = vrot.slane %v635, %v647
    %vm649 = vcmask 1041409
    %v650 = vsel %vm649, %v648, %v644
    %vm652 = vcmask 58368
    %v653 = vsel %vm652, %v650, -inf
    %654 = vmax.xlane.f32.xlu0 %v653
    %v655 = vpop.xlane.xlu0 %654
    %v656 = vmax.f32 %v636, %v655
    %v657 = vsub.f32 %v636, %v656
    %v658 = vmul.f32 %v657, 1.442695
    %v659 = vpow.pop %v658
    %661 = vset.pattern.permute.xlu0 0
    %662 = vperm.xlu0 %661, %v656
    %v663 = vpop.permute.xlu0 %662
    %v664 = vlaneseq
    %v665 = vshrl.u32 %v664, 7
    %v666 = vsub.s32 0, %v665
    %v667 = vrot.slane %v663, %v666
    %v668 = vlaneseq
    %v669 = vshrl.u32 %v668, 7
    %v670 = vsub.s32 1, %v669
    %v671 = vrot.slane %v663, %v670
    %v674 = vsub.f32 %v632, %v667
    %v675 = vsub.f32 %v635, %v671
    %v676 = vmul.f32 %v674, 1.442695
    %v677 = vpow.pop %v676
    %v678 = vmul.f32 %v675, 1.442695
    %v679 = vpow.pop %v678
    %v680 = vld [vmem:[#allocation4] sm:$0x3]
    %v681 = vmul.f32 %v659, %v680
    %684 = vset.pattern.permute.xlu0 0
    %685 = vperm.xlu0 %684, %v677
    %v686 = vpop.permute.xlu0 %685
    %687 = vset.pattern.permute.xlu0 0
    %688 = vperm.xlu0 %687, %v679
    %v689 = vpop.permute.xlu0 %688
    %v690 = vlaneseq
    %v691 = vshrl.u32 %v690, 7
    %v692 = vsub.s32 %v640, %v691
    %v693 = vrot.slane %v686, %v692
    %v694 = vlaneseq
    %v695 = vshrl.u32 %v694, 7
    %v696 = vsub.s32 %v640, %v695
    %v697 = vrot.slane %v689, %v696
    %v698 = vsel %vm649, %v697, %v693
    %v700 = vsel %vm652, %v698, 0.0
    %701 = vadd.xlane.f32.xlu0 %v700
    %v702 = vpop.xlane.xlu0 %701
    %v703 = vadd.f32 %v681, %v702
    %vm704 = vcmask 1024
    %705 = vst.msk [vmem:[#allocation4] sm:$0x3] %vm704, %v703
    %v706 = vld [vmem:[#allocation5] sm:$0x3]
    %708 = vset.pattern.permute.xlu0 0
    %709 = vperm.xlu0 %708, %v659
    %v710 = vpop.permute.xlu0 %709
    %v712 = vmul.f32 %v710, %v706
    %v715 = vmul.f32 %v686, %v591
    %v716 = vmul.f32 %v689, %v592
    %v717 = vsel %vm629, %v715, 0.0
    %v718 = vrot.slane %v717, 4
    %v719 = vadd.f32 %v717, %v718
    %v720 = vrot.slane %v719, 2
    %v721 = vadd.f32 %v719, %v720
    %v722 = vrot.slane %v721, 1
    %v723 = vadd.f32 %v721, %v722
    %v724 = vsel %vm629, %v716, 0.0
    %v725 = vrot.slane %v724, 4
    %v726 = vadd.f32 %v724, %v725
    %v727 = vrot.slane %v726, 2
    %v728 = vadd.f32 %v726, %v727
    %v729 = vrot.slane %v728, 1
    %v730 = vadd.f32 %v728, %v729
    %v733 = vsel %vm649, %v730, %v723
    %v735 = vadd.f32 %v712, %v733
    %vm736 = vcmask 254976
    %737 = vst.msk [vmem:[#allocation5] sm:$0x3] %vm736, %v735
    %738 = vst.msk [vmem:[#allocation3] sm:$0x3] %vm704, %v656
    // Predicated region
    $region46: #{tpu_custom_call.1} parent=1 // pred_check
      %p739 = pneg %p87
    $region47: #{tpu_custom_call.1} parent=1 // pred_check_branch
      %741 = sbr.rel (%p739) target = $region49
    $region48: #{tpu_custom_call.1} parent=1 // pred_region
      %v742 = vld [vmem:[#allocation5] sm:$0x3]
      %v743 = vld [vmem:[#allocation4] sm:$0x3]
      %745 = vset.pattern.permute.xlu0 0
      %746 = vperm.xlu0 %745, %v743
      %v747 = vpop.permute.xlu0 %746
      %v749 = vrcp.pop %v747
      %v750 = vmul.f32 %v742, %v749
      %v751 = vld [vmem:[#allocation12] sm:$0xff]
      %v752 = vld [vmem:[#allocation12 + $0x8] sm:$0xff]
      %v753 = vld [vmem:[#allocation12 + $0x10] sm:$0xff]
      %v754 = vld [vmem:[#allocation12 + $0x18] sm:$0xff]
      %v755 = vld [vmem:[#allocation6] sm:$0x3]
      %v756 = vld [vmem:[#allocation14] sm:$0xff]
      %v757 = vld [vmem:[#allocation14 + $0x8] sm:$0xff]
      %v758 = vld [vmem:[#allocation14 + $0x10] sm:$0xff]
      %v759 = vld [vmem:[#allocation14 + $0x18] sm:$0xff]
      %v761 = vsel %vm629, %v755, 0
      %763 = vmatprep.subr.mxu0 0.0
      %v764 = vand.u32 %v756, 4294901760
      %765 = vmatpush1.msra.mxu0 %v764
      %766 = vmatprep.subr.mxu0 0.0
      %v767 = vand.u32 %v757, 4294901760
      %768 = vmatpush1.msra.mxu0 %v767
      %769 = vmatprep.subr.mxu0 0.0
      %v770 = vand.u32 %v758, 4294901760
      %771 = vmatpush1.msra.mxu0 %v770
      %772 = vmatprep.subr.mxu0 0.0
      %v773 = vand.u32 %v759, 4294901760
      %774 = vmatpush1.msra.mxu0 %v773
      %775 = vmatprep.subr.mxu0 0.0
      %776 = vmatpush1.msra.mxu0 0.0
      %777 = vmatprep.subr.mxu0 0.0
      %778 = vmatpush1.msra.mxu0 0.0
      %779 = vmatprep.subr.mxu0 0.0
      %780 = vmatpush1.msra.mxu0 0.0
      %781 = vmatprep.subr.mxu0 0.0
      %782 = vmatpush1.msra.mxu0 0.0
      %783 = vmatprep.subr.mxu0 0.0
      %784 = vmatpush1.msra.mxu0 0.0
      %785 = vmatprep.subr.mxu0 0.0
      %786 = vmatpush1.msra.mxu0 0.0
      %787 = vmatprep.subr.mxu0 0.0
      %788 = vmatpush1.msra.mxu0 0.0
      %789 = vmatprep.subr.mxu0 0.0
      %790 = vmatpush1.msra.mxu0 0.0
      %791 = vmatprep.subr.mxu0 0.0
      %792 = vmatpush1.msra.mxu0 0.0
      %793 = vmatprep.subr.mxu0 0.0
      %794 = vmatpush1.msra.mxu0 0.0
      %795 = vmatprep.subr.mxu0 0.0
      %796 = vmatpush1.msra.mxu0 0.0
      %797 = vmatprep.subr.mxu0 0.0
      %798 = vmatpush1.msra.mxu0 0.0
      %799 = vmatprep.subr.mxu0 0.0
      %800 = vmatpush1.msra.mxu0 0.0
      %801 = vmatprep.subr.mxu0 0.0
      %802 = vmatpush1.msra.mxu0 0.0
      %803 = vmatprep.subr.mxu0 0.0
      %804 = vmatpush1.msra.mxu0 0.0
      %805 = vmatprep.subr.mxu0 0.0
      %806 = vmatpush1.msra.mxu0 0.0
      %807 = vmatprep.subr.mxu0 0.0
      %808 = vmatpush1.msra.mxu0 0.0
      %809 = vmatprep.subr.mxu0 0.0
      %810 = vmatpush1.msra.mxu0 0.0
      %811 = vmatprep.subr.mxu0 0.0
      %812 = vmatpush1.msra.mxu0 0.0
      %813 = vmatprep.subr.mxu0 0.0
      %814 = vmatpush1.msra.mxu0 0.0
      %815 = vmatprep.subr.mxu0 0.0
      %816 = vmatpush1.msra.mxu0 0.0
      %817 = vmatprep.subr.mxu0 0.0
      %818 = vmatpush1.msra.mxu0 0.0
      %819 = vmatprep.subr.mxu0 0.0
      %820 = vmatpush1.msra.mxu0 0.0
      %821 = vmatprep.subr.mxu0 0.0
      %822 = vmatpush1.msra.mxu0 0.0
      %823 = vmatprep.subr.mxu0 0.0
      %824 = vmatpush1.msra.mxu0 0.0
      %825 = vmatprep.subr.mxu0 0.0
      %826 = vmatpush1.msra.mxu0 0.0
      %827 = vmatprep.subr.mxu0 0.0
      %828 = vmatpush1.msra.mxu0 0.0
      %829 = vmatprep.subr.mxu0 0.0
      %830 = vmatpush1.msra.mxu0 0.0
      %831 = vmatprep.mubr.f32.mxu0 0.0
      %v832 = vand.u32 %v761, 4294901760
      %v833 = vsub.f32 %v761, %v832
      %v834 = vand.u32 %v833, 4294901760
      %v835 = vsub.f32 %v833, %v834
      %v836 = vand.u32 %v835, 4294901760
      %837 = vmatmul.mubr.f32.gmra.mrb[0].mxu0 %v836
      %v838 = vpop.f32.mrb[0].mxu0
      %v839 = vadd.f32 0.0, %v838
      %v840 = vpop.f32.mrb[0].mxu0
      %841 = vdwg.mxu0
      %842 = vmatprep.subr.mxu0 0.0
      %v843 = vand.u32 %v756, 4294901760
      %v844 = vsub.f32 %v756, %v843
      %v845 = vand.u32 %v844, 4294901760
      %v846 = vsub.f32 %v844, %v845
      %v847 = vand.u32 %v846, 4294901760
      %848 = vmatpush1.msra.mxu0 %v847
      %849 = vmatprep.subr.mxu0 0.0
      %v850 = vand.u32 %v757, 4294901760
      %v851 = vsub.f32 %v757, %v850
      %v852 = vand.u32 %v851, 4294901760
      %v853 = vsub.f32 %v851, %v852
      %v854 = vand.u32 %v853, 4294901760
      %855 = vmatpush1.msra.mxu0 %v854
      %856 = vmatprep.subr.mxu0 0.0
      %v857 = vand.u32 %v758, 4294901760
      %v858 = vsub.f32 %v758, %v857
      %v859 = vand.u32 %v858, 4294901760
      %v860 = vsub.f32 %v858, %v859
      %v861 = vand.u32 %v860, 4294901760
      %862 = vmatpush1.msra.mxu0 %v861
      %863 = vmatprep.subr.mxu0 0.0
      %v864 = vand.u32 %v759, 4294901760
      %v865 = vsub.f32 %v759, %v864
      %v866 = vand.u32 %v865, 4294901760
      %v867 = vsub.f32 %v865, %v866
      %v868 = vand.u32 %v867, 4294901760
      %869 = vmatpush1.msra.mxu0 %v868
      %870 = vmatprep.subr.mxu0 0.0
      %871 = vmatpush1.msra.mxu0 0.0
      %872 = vmatprep.subr.mxu0 0.0
      %873 = vmatpush1.msra.mxu0 0.0
      %874 = vmatprep.subr.mxu0 0.0
      %875 = vmatpush1.msra.mxu0 0.0
      %876 = vmatprep.subr.mxu0 0.0
      %877 = vmatpush1.msra.mxu0 0.0
      %878 = vmatprep.subr.mxu0 0.0
      %879 = vmatpush1.msra.mxu0 0.0
      %880 = vmatprep.subr.mxu0 0.0
      %881 = vmatpush1.msra.mxu0 0.0
      %882 = vmatprep.subr.mxu0 0.0
      %883 = vmatpush1.msra.mxu0 0.0
      %884 = vmatprep.subr.mxu0 0.0
      %885 = vmatpush1.msra.mxu0 0.0
      %886 = vmatprep.subr.mxu0 0.0
      %887 = vmatpush1.msra.mxu0 0.0
      %888 = vmatprep.subr.mxu0 0.0
      %889 = vmatpush1.msra.mxu0 0.0
      %890 = vmatprep.subr.mxu0 0.0
      %891 = vmatpush1.msra.mxu0 0.0
      %892 = vmatprep.subr.mxu0 0.0
      %893 = vmatpush1.msra.mxu0 0.0
      %894 = vmatprep.subr.mxu0 0.0
      %895 = vmatpush1.msra.mxu0 0.0
      %896 = vmatprep.subr.mxu0 0.0
      %897 = vmatpush1.msra.mxu0 0.0
      %898 = vmatprep.subr.mxu0 0.0
      %899 = vmatpush1.msra.mxu0 0.0
      %900 = vmatprep.subr.mxu0 0.0
      %901 = vmatpush1.msra.mxu0 0.0
      %902 = vmatprep.subr.mxu0 0.0
      %903 = vmatpush1.msra.mxu0 0.0
      %904 = vmatprep.subr.mxu0 0.0
      %905 = vmatpush1.msra.mxu0 0.0
      %906 = vmatprep.subr.mxu0 0.0
      %907 = vmatpush1.msra.mxu0 0.0
      %908 = vmatprep.subr.mxu0 0.0
      %909 = vmatpush1.msra.mxu0 0.0
      %910 = vmatprep.subr.mxu0 0.0
      %911 = vmatpush1.msra.mxu0 0.0
      %912 = vmatprep.subr.mxu0 0.0
      %913 = vmatpush1.msra.mxu0 0.0
      %914 = vmatprep.subr.mxu0 0.0
      %915 = vmatpush1.msra.mxu0 0.0
      %916 = vmatprep.subr.mxu0 0.0
      %917 = vmatpush1.msra.mxu0 0.0
      %918 = vmatprep.subr.mxu0 0.0
      %919 = vmatpush1.msra.mxu0 0.0
      %920 = vmatprep.subr.mxu0 0.0
      %921 = vmatpush1.msra.mxu0 0.0
      %922 = vmatprep.subr.mxu0 0.0
      %923 = vmatpush1.msra.mxu0 0.0
      %924 = vmatprep.subr.mxu0 0.0
      %925 = vmatpush1.msra.mxu0 0.0
      %926 = vmatprep.mubr.f32.mxu0 0.0
      %v927 = vand.u32 %v761, 4294901760
      %928 = vmatmul.mubr.f32.gmra.mrb[0].mxu0 %v927
      %v929 = vpop.f32.mrb[0].mxu0
      %v930 = vadd.f32 %v839, %v929
      %v931 = vpop.f32.mrb[0].mxu0
      %932 = vdwg.mxu0
      %933 = vmatprep.subr.mxu0 0.0
      %v934 = vand.u32 %v756, 4294901760
      %v935 = vsub.f32 %v756, %v934
      %936 = vmatpush1.msra.mxu0 %v935
      %937 = vmatprep.subr.mxu0 0.0
      %v938 = vand.u32 %v757, 4294901760
      %v939 = vsub.f32 %v757, %v938
      %940 = vmatpush1.msra.mxu0 %v939
      %941 = vmatprep.subr.mxu0 0.0
      %v942 = vand.u32 %v758, 4294901760
      %v943 = vsub.f32 %v758, %v942
      %944 = vmatpush1.msra.mxu0 %v943
      %945 = vmatprep.subr.mxu0 0.0
      %v946 = vand.u32 %v759, 4294901760
      %v947 = vsub.f32 %v759, %v946
      %948 = vmatpush1.msra.mxu0 %v947
      %949 = vmatprep.subr.mxu0 0.0
      %950 = vmatpush1.msra.mxu0 0.0
      %951 = vmatprep.subr.mxu0 0.0
      %952 = vmatpush1.msra.mxu0 0.0
      %953 = vmatprep.subr.mxu0 0.0
      %954 = vmatpush1.msra.mxu0 0.0
      %955 = vmatprep.subr.mxu0 0.0
      %956 = vmatpush1.msra.mxu0 0.0
      %957 = vmatprep.subr.mxu0 0.0
      %958 = vmatpush1.msra.mxu0 0.0
      %959 = vmatprep.subr.mxu0 0.0
      %960 = vmatpush1.msra.mxu0 0.0
      %961 = vmatprep.subr.mxu0 0.0
      %962 = vmatpush1.msra.mxu0 0.0
      %963 = vmatprep.subr.mxu0 0.0
      %964 = vmatpush1.msra.mxu0 0.0
      %965 = vmatprep.subr.mxu0 0.0
      %966 = vmatpush1.msra.mxu0 0.0
      %967 = vmatprep.subr.mxu0 0.0
      %968 = vmatpush1.msra.mxu0 0.0
      %969 = vmatprep.subr.mxu0 0.0
      %970 = vmatpush1.msra.mxu0 0.0
      %971 = vmatprep.subr.mxu0 0.0
      %972 = vmatpush1.msra.mxu0 0.0
      %973 = vmatprep.subr.mxu0 0.0
      %974 = vmatpush1.msra.mxu0 0.0
      %975 = vmatprep.subr.mxu0 0.0
      %976 = vmatpush1.msra.mxu0 0.0
      %977 = vmatprep.subr.mxu0 0.0
      %978 = vmatpush1.msra.mxu0 0.0
      %979 = vmatprep.subr.mxu0 0.0
      %980 = vmatpush1.msra.mxu0 0.0
      %981 = vmatprep.subr.mxu0 0.0
      %982 = vmatpush1.msra.mxu0 0.0
      %983 = vmatprep.subr.mxu0 0.0
      %984 = vmatpush1.msra.mxu0 0.0
      %985 = vmatprep.subr.mxu0 0.0
      %986 = vmatpush1.msra.mxu0 0.0
      %987 = vmatprep.subr.mxu0 0.0
      %988 = vmatpush1.msra.mxu0 0.0
      %989 = vmatprep.subr.mxu0 0.0
      %990 = vmatpush1.msra.mxu0 0.0
      %991 = vmatprep.subr.mxu0 0.0
      %992 = vmatpush1.msra.mxu0 0.0
      %993 = vmatprep.subr.mxu0 0.0
      %994 = vmatpush1.msra.mxu0 0.0
      %995 = vmatprep.subr.mxu0 0.0
      %996 = vmatpush1.msra.mxu0 0.0
      %997 = vmatprep.subr.mxu0 0.0
      %998 = vmatpush1.msra.mxu0 0.0
      %999 = vmatprep.subr.mxu0 0.0
      %1000 = vmatpush1.msra.mxu0 0.0
      %1001 = vmatprep.subr.mxu0 0.0
      %1002 = vmatpush1.msra.mxu0 0.0
      %1003 = vmatprep.subr.mxu0 0.0
      %1004 = vmatpush1.msra.mxu0 0.0
      %1005 = vmatprep.mubr.f32.mxu0 0.0
      %v1006 = vand.u32 %v761, 4294901760
      %v1007 = vsub.f32 %v761, %v1006
      %1008 = vmatmul.mubr.f32.gmra.mrb[0].mxu0 %v1007
      %v1009 = vpop.f32.mrb[0].mxu0
      %v1010 = vadd.f32 %v930, %v1009
      %v1011 = vpop.f32.mrb[0].mxu0
      %1012 = vdwg.mxu0
      %1013 = vmatprep.subr.mxu0 0.0
      %v1014 = vand.u32 %v756, 4294901760
      %1015 = vmatpush1.msra.mxu0 %v1014
      %1016 = vmatprep.subr.mxu0 0.0
      %v1017 = vand.u32 %v757, 4294901760
      %1018 = vmatpush1.msra.mxu0 %v1017
      %1019 = vmatprep.subr.mxu0 0.0
      %v1020 = vand.u32 %v758, 4294901760
      %1021 = vmatpush1.msra.mxu0 %v1020
      %1022 = vmatprep.subr.mxu0 0.0
      %v1023 = vand.u32 %v759, 4294901760
      %1024 = vmatpush1.msra.mxu0 %v1023
      %1025 = vmatprep.subr.mxu0 0.0
      %1026 = vmatpush1.msra.mxu0 0.0
      %1027 = vmatprep.subr.mxu0 0.0
      %1028 = vmatpush1.msra.mxu0 0.0
      %1029 = vmatprep.subr.mxu0 0.0
      %1030 = vmatpush1.msra.mxu0 0.0
      %1031 = vmatprep.subr.mxu0 0.0
      %1032 = vmatpush1.msra.mxu0 0.0
      %1033 = vmatprep.subr.mxu0 0.0
      %1034 = vmatpush1.msra.mxu0 0.0
      %1035 = vmatprep.subr.mxu0 0.0
      %1036 = vmatpush1.msra.mxu0 0.0
      %1037 = vmatprep.subr.mxu0 0.0
      %1038 = vmatpush1.msra.mxu0 0.0
      %1039 = vmatprep.subr.mxu0 0.0
      %1040 = vmatpush1.msra.mxu0 0.0
      %1041 = vmatprep.subr.mxu0 0.0
      %1042 = vmatpush1.msra.mxu0 0.0
      %1043 = vmatprep.subr.mxu0 0.0
      %1044 = vmatpush1.msra.mxu0 0.0
      %1045 = vmatprep.subr.mxu0 0.0
      %1046 = vmatpush1.msra.mxu0 0.0
      %1047 = vmatprep.subr.mxu0 0.0
      %1048 = vmatpush1.msra.mxu0 0.0
      %1049 = vmatprep.subr.mxu0 0.0
      %1050 = vmatpush1.msra.mxu0 0.0
      %1051 = vmatprep.subr.mxu0 0.0
      %1052 = vmatpush1.msra.mxu0 0.0
      %1053 = vmatprep.subr.mxu0 0.0
      %1054 = vmatpush1.msra.mxu0 0.0
      %1055 = vmatprep.subr.mxu0 0.0
      %1056 = vmatpush1.msra.mxu0 0.0
      %1057 = vmatprep.subr.mxu0 0.0
      %1058 = vmatpush1.msra.mxu0 0.0
      %1059 = vmatprep.subr.mxu0 0.0
      %1060 = vmatpush1.msra.mxu0 0.0
      %1061 = vmatprep.subr.mxu0 0.0
      %1062 = vmatpush1.msra.mxu0 0.0
      %1063 = vmatprep.subr.mxu0 0.0
      %1064 = vmatpush1.msra.mxu0 0.0
      %1065 = vmatprep.subr.mxu0 0.0
      %1066 = vmatpush1.msra.mxu0 0.0
      %1067 = vmatprep.subr.mxu0 0.0
      %1068 = vmatpush1.msra.mxu0 0.0
      %1069 = vmatprep.subr.mxu0 0.0
      %1070 = vmatpush1.msra.mxu0 0.0
      %1071 = vmatprep.subr.mxu0 0.0
      %1072 = vmatpush1.msra.mxu0 0.0
      %1073 = vmatprep.subr.mxu0 0.0
      %1074 = vmatpush1.msra.mxu0 0.0
      %1075 = vmatprep.subr.mxu0 0.0
      %1076 = vmatpush1.msra.mxu0 0.0
      %1077 = vmatprep.subr.mxu0 0.0
      %1078 = vmatpush1.msra.mxu0 0.0
      %1079 = vmatprep.subr.mxu0 0.0
      %1080 = vmatpush1.msra.mxu0 0.0
      %1081 = vmatprep.mubr.f32.mxu0 0.0
      %v1082 = vand.u32 %v761, 4294901760
      %v1083 = vsub.f32 %v761, %v1082
      %v1084 = vand.u32 %v1083, 4294901760
      %1085 = vmatmul.mubr.f32.gmra.mrb[0].mxu0 %v1084
      %v1086 = vpop.f32.mrb[0].mxu0
      %v1087 = vadd.f32 %v1010, %v1086
      %v1088 = vpop.f32.mrb[0].mxu0
      %1089 = vdwg.mxu0
      %1090 = vmatprep.subr.mxu0 0.0
      %v1091 = vand.u32 %v756, 4294901760
      %v1092 = vsub.f32 %v756, %v1091
      %v1093 = vand.u32 %v1092, 4294901760
      %1094 = vmatpush1.msra.mxu0 %v1093
      %1095 = vmatprep.subr.mxu0 0.0
      %v1096 = vand.u32 %v757, 4294901760
      %v1097 = vsub.f32 %v757, %v1096
      %v1098 = vand.u32 %v1097, 4294901760
      %1099 = vmatpush1.msra.mxu0 %v1098
      %1100 = vmatprep.subr.mxu0 0.0
      %v1101 = vand.u32 %v758, 4294901760
      %v1102 = vsub.f32 %v758, %v1101
      %v1103 = vand.u32 %v1102, 4294901760
      %1104 = vmatpush1.msra.mxu0 %v1103
      %1105 = vmatprep.subr.mxu0 0.0
      %v1106 = vand.u32 %v759, 4294901760
      %v1107 = vsub.f32 %v759, %v1106
      %v1108 = vand.u32 %v1107, 4294901760
      %1109 = vmatpush1.msra.mxu0 %v1108
      %1110 = vmatprep.subr.mxu0 0.0
      %1111 = vmatpush1.msra.mxu0 0.0
      %1112 = vmatprep.subr.mxu0 0.0
      %1113 = vmatpush1.msra.mxu0 0.0
      %1114 = vmatprep.subr.mxu0 0.0
      %1115 = vmatpush1.msra.mxu0 0.0
      %1116 = vmatprep.subr.mxu0 0.0
      %1117 = vmatpush1.msra.mxu0 0.0
      %1118 = vmatprep.subr.mxu0 0.0
      %1119 = vmatpush1.msra.mxu0 0.0
      %1120 = vmatprep.subr.mxu0 0.0
      %1121 = vmatpush1.msra.mxu0 0.0
      %1122 = vmatprep.subr.mxu0 0.0
      %1123 = vmatpush1.msra.mxu0 0.0
      %1124 = vmatprep.subr.mxu0 0.0
      %1125 = vmatpush1.msra.mxu0 0.0
      %1126 = vmatprep.subr.mxu0 0.0
      %1127 = vmatpush1.msra.mxu0 0.0
      %1128 = vmatprep.subr.mxu0 0.0
      %1129 = vmatpush1.msra.mxu0 0.0
      %1130 = vmatprep.subr.mxu0 0.0
      %1131 = vmatpush1.msra.mxu0 0.0
      %1132 = vmatprep.subr.mxu0 0.0
      %1133 = vmatpush1.msra.mxu0 0.0
      %1134 = vmatprep.subr.mxu0 0.0
      %1135 = vmatpush1.msra.mxu0 0.0
      %1136 = vmatprep.subr.mxu0 0.0
      %1137 = vmatpush1.msra.mxu0 0.0
      %1138 = vmatprep.subr.mxu0 0.0
      %1139 = vmatpush1.msra.mxu0 0.0
      %1140 = vmatprep.subr.mxu0 0.0
      %1141 = vmatpush1.msra.mxu0 0.0
      %1142 = vmatprep.subr.mxu0 0.0
      %1143 = vmatpush1.msra.mxu0 0.0
      %1144 = vmatprep.subr.mxu0 0.0
      %1145 = vmatpush1.msra.mxu0 0.0
      %1146 = vmatprep.subr.mxu0 0.0
      %1147 = vmatpush1.msra.mxu0 0.0
      %1148 = vmatprep.subr.mxu0 0.0
      %1149 = vmatpush1.msra.mxu0 0.0
      %1150 = vmatprep.subr.mxu0 0.0
      %1151 = vmatpush1.msra.mxu0 0.0
      %1152 = vmatprep.subr.mxu0 0.0
      %1153 = vmatpush1.msra.mxu0 0.0
      %1154 = vmatprep.subr.mxu0 0.0
      %1155 = vmatpush1.msra.mxu0 0.0
      %1156 = vmatprep.subr.mxu0 0.0
      %1157 = vmatpush1.msra.mxu0 0.0
      %1158 = vmatprep.subr.mxu0 0.0
      %1159 = vmatpush1.msra.mxu0 0.0
      %1160 = vmatprep.subr.mxu0 0.0
      %1161 = vmatpush1.msra.mxu0 0.0
      %1162 = vmatprep.subr.mxu0 0.0
      %1163 = vmatpush1.msra.mxu0 0.0
      %1164 = vmatprep.subr.mxu0 0.0
      %1165 = vmatpush1.msra.mxu0 0.0
      %1166 = vmatprep.mubr.f32.mxu0 0.0
      %v1167 = vand.u32 %v761, 4294901760
      %1168 = vmatmul.mubr.f32.gmra.mrb[0].mxu0 %v1167
      %v1169 = vpop.f32.mrb[0].mxu0
      %v1170 = vadd.f32 %v1087, %v1169
      %v1171 = vpop.f32.mrb[0].mxu0
      %1172 = vdwg.mxu0
      %1173 = vmatprep.subr.mxu0 0.0
      %v1174 = vand.u32 %v756, 4294901760
      %1175 = vmatpush1.msra.mxu0 %v1174
      %1176 = vmatprep.subr.mxu0 0.0
      %v1177 = vand.u32 %v757, 4294901760
      %1178 = vmatpush1.msra.mxu0 %v1177
      %1179 = vmatprep.subr.mxu0 0.0
      %v1180 = vand.u32 %v758, 4294901760
      %1181 = vmatpush1.msra.mxu0 %v1180
      %1182 = vmatprep.subr.mxu0 0.0
      %v1183 = vand.u32 %v759, 4294901760
      %1184 = vmatpush1.msra.mxu0 %v1183
      %1185 = vmatprep.subr.mxu0 0.0
      %1186 = vmatpush1.msra.mxu0 0.0
      %1187 = vmatprep.subr.mxu0 0.0
      %1188 = vmatpush1.msra.mxu0 0.0
      %1189 = vmatprep.subr.mxu0 0.0
      %1190 = vmatpush1.msra.mxu0 0.0
      %1191 = vmatprep.subr.mxu0 0.0
      %1192 = vmatpush1.msra.mxu0 0.0
      %1193 = vmatprep.subr.mxu0 0.0
      %1194 = vmatpush1.msra.mxu0 0.0
      %1195 = vmatprep.subr.mxu0 0.0
      %1196 = vmatpush1.msra.mxu0 0.0
      %1197 = vmatprep.subr.mxu0 0.0
      %1198 = vmatpush1.msra.mxu0 0.0
      %1199 = vmatprep.subr.mxu0 0.0
      %1200 = vmatpush1.msra.mxu0 0.0
      %1201 = vmatprep.subr.mxu0 0.0
      %1202 = vmatpush1.msra.mxu0 0.0
      %1203 = vmatprep.subr.mxu0 0.0
      %1204 = vmatpush1.msra.mxu0 0.0
      %1205 = vmatprep.subr.mxu0 0.0
      %1206 = vmatpush1.msra.mxu0 0.0
      %1207 = vmatprep.subr.mxu0 0.0
      %1208 = vmatpush1.msra.mxu0 0.0
      %1209 = vmatprep.subr.mxu0 0.0
      %1210 = vmatpush1.msra.mxu0 0.0
      %1211 = vmatprep.subr.mxu0 0.0
      %1212 = vmatpush1.msra.mxu0 0.0
      %1213 = vmatprep.subr.mxu0 0.0
      %1214 = vmatpush1.msra.mxu0 0.0
      %1215 = vmatprep.subr.mxu0 0.0
      %1216 = vmatpush1.msra.mxu0 0.0
      %1217 = vmatprep.subr.mxu0 0.0
      %1218 = vmatpush1.msra.mxu0 0.0
      %1219 = vmatprep.subr.mxu0 0.0
      %1220 = vmatpush1.msra.mxu0 0.0
      %1221 = vmatprep.subr.mxu0 0.0
      %1222 = vmatpush1.msra.mxu0 0.0
      %1223 = vmatprep.subr.mxu0 0.0
      %1224 = vmatpush1.msra.mxu0 0.0
      %1225 = vmatprep.subr.mxu0 0.0
      %1226 = vmatpush1.msra.mxu0 0.0
      %1227 = vmatprep.subr.mxu0 0.0
      %1228 = vmatpush1.msra.mxu0 0.0
      %1229 = vmatprep.subr.mxu0 0.0
      %1230 = vmatpush1.msra.mxu0 0.0
      %1231 = vmatprep.subr.mxu0 0.0
      %1232 = vmatpush1.msra.mxu0 0.0
      %1233 = vmatprep.subr.mxu0 0.0
      %1234 = vmatpush1.msra.mxu0 0.0
      %1235 = vmatprep.subr.mxu0 0.0
      %1236 = vmatpush1.msra.mxu0 0.0
      %1237 = vmatprep.subr.mxu0 0.0
      %1238 = vmatpush1.msra.mxu0 0.0
      %1239 = vmatprep.subr.mxu0 0.0
      %1240 = vmatpush1.msra.mxu0 0.0
      %1241 = vmatprep.mubr.f32.mxu0 0.0
      %v1242 = vand.u32 %v761, 4294901760
      %1243 = vmatmul.mubr.f32.gmra.mrb[0].mxu0 %v1242
      %v1244 = vpop.f32.mrb[0].mxu0
      %v1245 = vadd.f32 %v1170, %v1244
      %v1246 = vpop.f32.mrb[0].mxu0
      %1247 = vdwg.mxu0
      %v1249 = vsel %vm629, %v750, 0
      %1251 = vmatprep.subr.mxu0 0.0
      %v1252 = vand.u32 %v751, 4294901760
      %1253 = vmatpush1.msra.mxu0 %v1252
      %1254 = vmatprep.subr.mxu0 0.0
      %v1255 = vand.u32 %v752, 4294901760
      %1256 = vmatpush1.msra.mxu0 %v1255
      %1257 = vmatprep.subr.mxu0 0.0
      %v1258 = vand.u32 %v753, 4294901760
      %1259 = vmatpush1.msra.mxu0 %v1258
      %1260 = vmatprep.subr.mxu0 0.0
      %v1261 = vand.u32 %v754, 4294901760
      %1262 = vmatpush1.msra.mxu0 %v1261
      %1263 = vmatprep.subr.mxu0 0.0
      %1264 = vmatpush1.msra.mxu0 0.0
      %1265 = vmatprep.subr.mxu0 0.0
      %1266 = vmatpush1.msra.mxu0 0.0
      %1267 = vmatprep.subr.mxu0 0.0
      %1268 = vmatpush1.msra.mxu0 0.0
      %1269 = vmatprep.subr.mxu0 0.0
      %1270 = vmatpush1.msra.mxu0 0.0
      %1271 = vmatprep.subr.mxu0 0.0
      %1272 = vmatpush1.msra.mxu0 0.0
      %1273 = vmatprep.subr.mxu0 0.0
      %1274 = vmatpush1.msra.mxu0 0.0
      %1275 = vmatprep.subr.mxu0 0.0
      %1276 = vmatpush1.msra.mxu0 0.0
      %1277 = vmatprep.subr.mxu0 0.0
      %1278 = vmatpush1.msra.mxu0 0.0
      %1279 = vmatprep.subr.mxu0 0.0
      %1280 = vmatpush1.msra.mxu0 0.0
      %1281 = vmatprep.subr.mxu0 0.0
      %1282 = vmatpush1.msra.mxu0 0.0
      %1283 = vmatprep.subr.mxu0 0.0
      %1284 = vmatpush1.msra.mxu0 0.0
      %1285 = vmatprep.subr.mxu0 0.0
      %1286 = vmatpush1.msra.mxu0 0.0
      %1287 = vmatprep.subr.mxu0 0.0
      %1288 = vmatpush1.msra.mxu0 0.0
      %1289 = vmatprep.subr.mxu0 0.0
      %1290 = vmatpush1.msra.mxu0 0.0
      %1291 = vmatprep.subr.mxu0 0.0
      %1292 = vmatpush1.msra.mxu0 0.0
      %1293 = vmatprep.subr.mxu0 0.0
      %1294 = vmatpush1.msra.mxu0 0.0
      %1295 = vmatprep.subr.mxu0 0.0
      %1296 = vmatpush1.msra.mxu0 0.0
      %1297 = vmatprep.subr.mxu0 0.0
      %1298 = vmatpush1.msra.mxu0 0.0
      %1299 = vmatprep.subr.mxu0 0.0
      %1300 = vmatpush1.msra.mxu0 0.0
      %1301 = vmatprep.subr.mxu0 0.0
      %1302 = vmatpush1.msra.mxu0 0.0
      %1303 = vmatprep.subr.mxu0 0.0
      %1304 = vmatpush1.msra.mxu0 0.0
      %1305 = vmatprep.subr.mxu0 0.0
      %1306 = vmatpush1.msra.mxu0 0.0
      %1307 = vmatprep.subr.mxu0 0.0
      %1308 = vmatpush1.msra.mxu0 0.0
      %1309 = vmatprep.subr.mxu0 0.0
      %1310 = vmatpush1.msra.mxu0 0.0
      %1311 = vmatprep.subr.mxu0 0.0
      %1312 = vmatpush1.msra.mxu0 0.0
      %1313 = vmatprep.subr.mxu0 0.0
      %1314 = vmatpush1.msra.mxu0 0.0
      %1315 = vmatprep.subr.mxu0 0.0
      %1316 = vmatpush1.msra.mxu0 0.0
      %1317 = vmatprep.subr.mxu0 0.0
      %1318 = vmatpush1.msra.mxu0 0.0
      %1319 = vmatprep.mubr.f32.mxu0 0.0
      %v1320 = vand.u32 %v1249, 4294901760
      %v1321 = vsub.f32 %v1249, %v1320
      %v1322 = vand.u32 %v1321, 4294901760
      %v1323 = vsub.f32 %v1321, %v1322
      %v1324 = vand.u32 %v1323, 4294901760
      %1325 = vmatmul.mubr.f32.gmra.mrb[0].mxu0 %v1324
      %v1326 = vpop.f32.mrb[0].mxu0
      %v1327 = vadd.f32 %v1245, %v1326
      %v1328 = vpop.f32.mrb[0].mxu0
      %1329 = vdwg.mxu0
      %1330 = vmatprep.subr.mxu0 0.0
      %v1331 = vand.u32 %v751, 4294901760
      %v1332 = vsub.f32 %v751, %v1331
      %v1333 = vand.u32 %v1332, 4294901760
      %v1334 = vsub.f32 %v1332, %v1333
      %v1335 = vand.u32 %v1334, 4294901760
      %1336 = vmatpush1.msra.mxu0 %v1335
      %1337 = vmatprep.subr.mxu0 0.0
      %v1338 = vand.u32 %v752, 4294901760
      %v1339 = vsub.f32 %v752, %v1338
      %v1340 = vand.u32 %v1339, 4294901760
      %v1341 = vsub.f32 %v1339, %v1340
      %v1342 = vand.u32 %v1341, 4294901760
      %1343 = vmatpush1.msra.mxu0 %v1342
      %1344 = vmatprep.subr.mxu0 0.0
      %v1345 = vand.u32 %v753, 4294901760
      %v1346 = vsub.f32 %v753, %v1345
      %v1347 = vand.u32 %v1346, 4294901760
      %v1348 = vsub.f32 %v1346, %v1347
      %v1349 = vand.u32 %v1348, 4294901760
      %1350 = vmatpush1.msra.mxu0 %v1349
      %1351 = vmatprep.subr.mxu0 0.0
      %v1352 = vand.u32 %v754, 4294901760
      %v1353 = vsub.f32 %v754, %v1352
      %v1354 = vand.u32 %v1353, 4294901760
      %v1355 = vsub.f32 %v1353, %v1354
      %v1356 = vand.u32 %v1355, 4294901760
      %1357 = vmatpush1.msra.mxu0 %v1356
      %1358 = vmatprep.subr.mxu0 0.0
      %1359 = vmatpush1.msra.mxu0 0.0
      %1360 = vmatprep.subr.mxu0 0.0
      %1361 = vmatpush1.msra.mxu0 0.0
      %1362 = vmatprep.subr.mxu0 0.0
      %1363 = vmatpush1.msra.mxu0 0.0
      %1364 = vmatprep.subr.mxu0 0.0
      %1365 = vmatpush1.msra.mxu0 0.0
      %1366 = vmatprep.subr.mxu0 0.0
      %1367 = vmatpush1.msra.mxu0 0.0
      %1368 = vmatprep.subr.mxu0 0.0
      %1369 = vmatpush1.msra.mxu0 0.0
      %1370 = vmatprep.subr.mxu0 0.0
      %1371 = vmatpush1.msra.mxu0 0.0
      %1372 = vmatprep.subr.mxu0 0.0
      %1373 = vmatpush1.msra.mxu0 0.0
      %1374 = vmatprep.subr.mxu0 0.0
      %1375 = vmatpush1.msra.mxu0 0.0
      %1376 = vmatprep.subr.mxu0 0.0
      %1377 = vmatpush1.msra.mxu0 0.0
      %1378 = vmatprep.subr.mxu0 0.0
      %1379 = vmatpush1.msra.mxu0 0.0
      %1380 = vmatprep.subr.mxu0 0.0
      %1381 = vmatpush1.msra.mxu0 0.0
      %1382 = vmatprep.subr.mxu0 0.0
      %1383 = vmatpush1.msra.mxu0 0.0
      %1384 = vmatprep.subr.mxu0 0.0
      %1385 = vmatpush1.msra.mxu0 0.0
      %1386 = vmatprep.subr.mxu0 0.0
      %1387 = vmatpush1.msra.mxu0 0.0
      %1388 = vmatprep.subr.mxu0 0.0
      %1389 = vmatpush1.msra.mxu0 0.0
      %1390 = vmatprep.subr.mxu0 0.0
      %1391 = vmatpush1.msra.mxu0 0.0
      %1392 = vmatprep.subr.mxu0 0.0
      %1393 = vmatpush1.msra.mxu0 0.0
      %1394 = vmatprep.subr.mxu0 0.0
      %1395 = vmatpush1.msra.mxu0 0.0
      %1396 = vmatprep.subr.mxu0 0.0
      %1397 = vmatpush1.msra.mxu0 0.0
      %1398 = vmatprep.subr.mxu0 0.0
      %1399 = vmatpush1.msra.mxu0 0.0
      %1400 = vmatprep.subr.mxu0 0.0
      %1401 = vmatpush1.msra.mxu0 0.0
      %1402 = vmatprep.subr.mxu0 0.0
      %1403 = vmatpush1.msra.mxu0 0.0
      %1404 = vmatprep.subr.mxu0 0.0
      %1405 = vmatpush1.msra.mxu0 0.0
      %1406 = vmatprep.subr.mxu0 0.0
      %1407 = vmatpush1.msra.mxu0 0.0
      %1408 = vmatprep.subr.mxu0 0.0
      %1409 = vmatpush1.msra.mxu0 0.0
      %1410 = vmatprep.subr.mxu0 0.0
      %1411 = vmatpush1.msra.mxu0 0.0
      %1412 = vmatprep.subr.mxu0 0.0
      %1413 = vmatpush1.msra.mxu0 0.0
      %1414 = vmatprep.mubr.f32.mxu0 0.0
      %v1415 = vand.u32 %v1249, 4294901760
      %1416 = vmatmul.mubr.f32.gmra.mrb[0].mxu0 %v1415
      %v1417 = vpop.f32.mrb[0].mxu0
      %v1418 = vadd.f32 %v1327, %v1417
      %v1419 = vpop.f32.mrb[0].mxu0
      %1420 = vdwg.mxu0
      %1421 = vmatprep.subr.mxu0 0.0
      %v1422 = vand.u32 %v751, 4294901760
      %v1423 = vsub.f32 %v751, %v1422
      %1424 = vmatpush1.msra.mxu0 %v1423
      %1425 = vmatprep.subr.mxu0 0.0
      %v1426 = vand.u32 %v752, 4294901760
      %v1427 = vsub.f32 %v752, %v1426
      %1428 = vmatpush1.msra.mxu0 %v1427
      %1429 = vmatprep.subr.mxu0 0.0
      %v1430 = vand.u32 %v753, 4294901760
      %v1431 = vsub.f32 %v753, %v1430
      %1432 = vmatpush1.msra.mxu0 %v1431
      %1433 = vmatprep.subr.mxu0 0.0
      %v1434 = vand.u32 %v754, 4294901760
      %v1435 = vsub.f32 %v754, %v1434
      %1436 = vmatpush1.msra.mxu0 %v1435
      %1437 = vmatprep.subr.mxu0 0.0
      %1438 = vmatpush1.msra.mxu0 0.0
      %1439 = vmatprep.subr.mxu0 0.0
      %1440 = vmatpush1.msra.mxu0 0.0
      %1441 = vmatprep.subr.mxu0 0.0
      %1442 = vmatpush1.msra.mxu0 0.0
      %1443 = vmatprep.subr.mxu0 0.0
      %1444 = vmatpush1.msra.mxu0 0.0
      %1445 = vmatprep.subr.mxu0 0.0
      %1446 = vmatpush1.msra.mxu0 0.0
      %1447 = vmatprep.subr.mxu0 0.0
      %1448 = vmatpush1.msra.mxu0 0.0
      %1449 = vmatprep.subr.mxu0 0.0
      %1450 = vmatpush1.msra.mxu0 0.0
      %1451 = vmatprep.subr.mxu0 0.0
      %1452 = vmatpush1.msra.mxu0 0.0
      %1453 = vmatprep.subr.mxu0 0.0
      %1454 = vmatpush1.msra.mxu0 0.0
      %1455 = vmatprep.subr.mxu0 0.0
      %1456 = vmatpush1.msra.mxu0 0.0
      %1457 = vmatprep.subr.mxu0 0.0
      %1458 = vmatpush1.msra.mxu0 0.0
      %1459 = vmatprep.subr.mxu0 0.0
      %1460 = vmatpush1.msra.mxu0 0.0
      %1461 = vmatprep.subr.mxu0 0.0
      %1462 = vmatpush1.msra.mxu0 0.0
      %1463 = vmatprep.subr.mxu0 0.0
      %1464 = vmatpush1.msra.mxu0 0.0
      %1465 = vmatprep.subr.mxu0 0.0
      %1466 = vmatpush1.msra.mxu0 0.0
      %1467 = vmatprep.subr.mxu0 0.0
      %1468 = vmatpush1.msra.mxu0 0.0
      %1469 = vmatprep.subr.mxu0 0.0
      %1470 = vmatpush1.msra.mxu0 0.0
      %1471 = vmatprep.subr.mxu0 0.0
      %1472 = vmatpush1.msra.mxu0 0.0
      %1473 = vmatprep.subr.mxu0 0.0
      %1474 = vmatpush1.msra.mxu0 0.0
      %1475 = vmatprep.subr.mxu0 0.0
      %1476 = vmatpush1.msra.mxu0 0.0
      %1477 = vmatprep.subr.mxu0 0.0
      %1478 = vmatpush1.msra.mxu0 0.0
      %1479 = vmatprep.subr.mxu0 0.0
      %1480 = vmatpush1.msra.mxu0 0.0
      %1481 = vmatprep.subr.mxu0 0.0
      %1482 = vmatpush1.msra.mxu0 0.0
      %1483 = vmatprep.subr.mxu0 0.0
      %1484 = vmatpush1.msra.mxu0 0.0
      %1485 = vmatprep.subr.mxu0 0.0
      %1486 = vmatpush1.msra.mxu0 0.0
      %1487 = vmatprep.subr.mxu0 0.0
      %1488 = vmatpush1.msra.mxu0 0.0
      %1489 = vmatprep.subr.mxu0 0.0
      %1490 = vmatpush1.msra.mxu0 0.0
      %1491 = vmatprep.subr.mxu0 0.0
      %1492 = vmatpush1.msra.mxu0 0.0
      %1493 = vmatprep.mubr.f32.mxu0 0.0
      %v1494 = vand.u32 %v1249, 4294901760
      %v1495 = vsub.f32 %v1249, %v1494
      %1496 = vmatmul.mubr.f32.gmra.mrb[0].mxu0 %v1495
      %v1497 = vpop.f32.mrb[0].mxu0
      %v1498 = vadd.f32 %v1418, %v1497
      %v1499 = vpop.f32.mrb[0].mxu0
      %1500 = vdwg.mxu0
      %1501 = vmatprep.subr.mxu0 0.0
      %v1502 = vand.u32 %v751, 4294901760
      %1503 = vmatpush1.msra.mxu0 %v1502
      %1504 = vmatprep.subr.mxu0 0.0
      %v1505 = vand.u32 %v752, 4294901760
      %1506 = vmatpush1.msra.mxu0 %v1505
      %1507 = vmatprep.subr.mxu0 0.0
      %v1508 = vand.u32 %v753, 4294901760
      %1509 = vmatpush1.msra.mxu0 %v1508
      %1510 = vmatprep.subr.mxu0 0.0
      %v1511 = vand.u32 %v754, 4294901760
      %1512 = vmatpush1.msra.mxu0 %v1511
      %1513 = vmatprep.subr.mxu0 0.0
      %1514 = vmatpush1.msra.mxu0 0.0
      %1515 = vmatprep.subr.mxu0 0.0
      %1516 = vmatpush1.msra.mxu0 0.0
      %1517 = vmatprep.subr.mxu0 0.0
      %1518 = vmatpush1.msra.mxu0 0.0
      %1519 = vmatprep.subr.mxu0 0.0
      %1520 = vmatpush1.msra.mxu0 0.0
      %1521 = vmatprep.subr.mxu0 0.0
      %1522 = vmatpush1.msra.mxu0 0.0
      %1523 = vmatprep.subr.mxu0 0.0
      %1524 = vmatpush1.msra.mxu0 0.0
      %1525 = vmatprep.subr.mxu0 0.0
      %1526 = vmatpush1.msra.mxu0 0.0
      %1527 = vmatprep.subr.mxu0 0.0
      %1528 = vmatpush1.msra.mxu0 0.0
      %1529 = vmatprep.subr.mxu0 0.0
      %1530 = vmatpush1.msra.mxu0 0.0
      %1531 = vmatprep.subr.mxu0 0.0
      %1532 = vmatpush1.msra.mxu0 0.0
      %1533 = vmatprep.subr.mxu0 0.0
      %1534 = vmatpush1.msra.mxu0 0.0
      %1535 = vmatprep.subr.mxu0 0.0
      %1536 = vmatpush1.msra.mxu0 0.0
      %1537 = vmatprep.subr.mxu0 0.0
      %1538 = vmatpush1.msra.mxu0 0.0
      %1539 = vmatprep.subr.mxu0 0.0
      %1540 = vmatpush1.msra.mxu0 0.0
      %1541 = vmatprep.subr.mxu0 0.0
      %1542 = vmatpush1.msra.mxu0 0.0
      %1543 = vmatprep.subr.mxu0 0.0
      %1544 = vmatpush1.msra.mxu0 0.0
      %1545 = vmatprep.subr.mxu0 0.0
      %1546 = vmatpush1.msra.mxu0 0.0
      %1547 = vmatprep.subr.mxu0 0.0
      %1548 = vmatpush1.msra.mxu0 0.0
      %1549 = vmatprep.subr.mxu0 0.0
      %1550 = vmatpush1.msra.mxu0 0.0
      %1551 = vmatprep.subr.mxu0 0.0
      %1552 = vmatpush1.msra.mxu0 0.0
      %1553 = vmatprep.subr.mxu0 0.0
      %1554 = vmatpush1.msra.mxu0 0.0
      %1555 = vmatprep.subr.mxu0 0.0
      %1556 = vmatpush1.msra.mxu0 0.0
      %1557 = vmatprep.subr.mxu0 0.0
      %1558 = vmatpush1.msra.mxu0 0.0
      %1559 = vmatprep.subr.mxu0 0.0
      %1560 = vmatpush1.msra.mxu0 0.0
      %1561 = vmatprep.subr.mxu0 0.0
      %1562 = vmatpush1.msra.mxu0 0.0
      %1563 = vmatprep.subr.mxu0 0.0
      %1564 = vmatpush1.msra.mxu0 0.0
      %1565 = vmatprep.subr.mxu0 0.0
      %1566 = vmatpush1.msra.mxu0 0.0
      %1567 = vmatprep.subr.mxu0 0.0
      %1568 = vmatpush1.msra.mxu0 0.0
      %1569 = vmatprep.mubr.f32.mxu0 0.0
      %v1570 = vand.u32 %v1249, 4294901760
      %v1571 = vsub.f32 %v1249, %v1570
      %v1572 = vand.u32 %v1571, 4294901760
      %1573 = vmatmul.mubr.f32.gmra.mrb[0].mxu0 %v1572
      %v1574 = vpop.f32.mrb[0].mxu0
      %v1575 = vadd.f32 %v1498, %v1574
      %v1576 = vpop.f32.mrb[0].mxu0
      %1577 = vdwg.mxu0
      %1578 = vmatprep.subr.mxu0 0.0
      %v1579 = vand.u32 %v751, 4294901760
      %v1580 = vsub.f32 %v751, %v1579
      %v1581 = vand.u32 %v1580, 4294901760
      %1582 = vmatpush1.msra.mxu0 %v1581
      %1583 = vmatprep.subr.mxu0 0.0
      %v1584 = vand.u32 %v752, 4294901760
      %v1585 = vsub.f32 %v752, %v1584
      %v1586 = vand.u32 %v1585, 4294901760
      %1587 = vmatpush1.msra.mxu0 %v1586
      %1588 = vmatprep.subr.mxu0 0.0
      %v1589 = vand.u32 %v753, 4294901760
      %v1590 = vsub.f32 %v753, %v1589
      %v1591 = vand.u32 %v1590, 4294901760
      %1592 = vmatpush1.msra.mxu0 %v1591
      %1593 = vmatprep.subr.mxu0 0.0
      %v1594 = vand.u32 %v754, 4294901760
      %v1595 = vsub.f32 %v754, %v1594
      %v1596 = vand.u32 %v1595, 4294901760
      %1597 = vmatpush1.msra.mxu0 %v1596
      %1598 = vmatprep.subr.mxu0 0.0
      %1599 = vmatpush1.msra.mxu0 0.0
      %1600 = vmatprep.subr.mxu0 0.0
      %1601 = vmatpush1.msra.mxu0 0.0
      %1602 = vmatprep.subr.mxu0 0.0
      %1603 = vmatpush1.msra.mxu0 0.0
      %1604 = vmatprep.subr.mxu0 0.0
      %1605 = vmatpush1.msra.mxu0 0.0
      %1606 = vmatprep.subr.mxu0 0.0
      %1607 = vmatpush1.msra.mxu0 0.0
      %1608 = vmatprep.subr.mxu0 0.0
      %1609 = vmatpush1.msra.mxu0 0.0
      %1610 = vmatprep.subr.mxu0 0.0
      %1611 = vmatpush1.msra.mxu0 0.0
      %1612 = vmatprep.subr.mxu0 0.0
      %1613 = vmatpush1.msra.mxu0 0.0
      %1614 = vmatprep.subr.mxu0 0.0
      %1615 = vmatpush1.msra.mxu0 0.0
      %1616 = vmatprep.subr.mxu0 0.0
      %1617 = vmatpush1.msra.mxu0 0.0
      %1618 = vmatprep.subr.mxu0 0.0
      %1619 = vmatpush1.msra.mxu0 0.0
      %1620 = vmatprep.subr.mxu0 0.0
      %1621 = vmatpush1.msra.mxu0 0.0
      %1622 = vmatprep.subr.mxu0 0.0
      %1623 = vmatpush1.msra.mxu0 0.0
      %1624 = vmatprep.subr.mxu0 0.0
      %1625 = vmatpush1.msra.mxu0 0.0
      %1626 = vmatprep.subr.mxu0 0.0
      %1627 = vmatpush1.msra.mxu0 0.0
      %1628 = vmatprep.subr.mxu0 0.0
      %1629 = vmatpush1.msra.mxu0 0.0
      %1630 = vmatprep.subr.mxu0 0.0
      %1631 = vmatpush1.msra.mxu0 0.0
      %1632 = vmatprep.subr.mxu0 0.0
      %1633 = vmatpush1.msra.mxu0 0.0
      %1634 = vmatprep.subr.mxu0 0.0
      %1635 = vmatpush1.msra.mxu0 0.0
      %1636 = vmatprep.subr.mxu0 0.0
      %1637 = vmatpush1.msra.mxu0 0.0
      %1638 = vmatprep.subr.mxu0 0.0
      %1639 = vmatpush1.msra.mxu0 0.0
      %1640 = vmatprep.subr.mxu0 0.0
      %1641 = vmatpush1.msra.mxu0 0.0
      %1642 = vmatprep.subr.mxu0 0.0
      %1643 = vmatpush1.msra.mxu0 0.0
      %1644 = vmatprep.subr.mxu0 0.0
      %1645 = vmatpush1.msra.mxu0 0.0
      %1646 = vmatprep.subr.mxu0 0.0
      %1647 = vmatpush1.msra.mxu0 0.0
      %1648 = vmatprep.subr.mxu0 0.0
      %1649 = vmatpush1.msra.mxu0 0.0
      %1650 = vmatprep.subr.mxu0 0.0
      %1651 = vmatpush1.msra.mxu0 0.0
      %1652 = vmatprep.subr.mxu0 0.0
      %1653 = vmatpush1.msra.mxu0 0.0
      %1654 = vmatprep.mubr.f32.mxu0 0.0
      %v1655 = vand.u32 %v1249, 4294901760
      %1656 = vmatmul.mubr.f32.gmra.mrb[0].mxu0 %v1655
      %v1657 = vpop.f32.mrb[0].mxu0
      %v1658 = vadd.f32 %v1575, %v1657
      %v1659 = vpop.f32.mrb[0].mxu0
      %1660 = vdwg.mxu0
      %1661 = vmatprep.subr.mxu0 0.0
      %v1662 = vand.u32 %v751, 4294901760
      %1663 = vmatpush1.msra.mxu0 %v1662
      %1664 = vmatprep.subr.mxu0 0.0
      %v1665 = vand.u32 %v752, 4294901760
      %1666 = vmatpush1.msra.mxu0 %v1665
      %1667 = vmatprep.subr.mxu0 0.0
      %v1668 = vand.u32 %v753, 4294901760
      %1669 = vmatpush1.msra.mxu0 %v1668
      %1670 = vmatprep.subr.mxu0 0.0
      %v1671 = vand.u32 %v754, 4294901760
      %1672 = vmatpush1.msra.mxu0 %v1671
      %1673 = vmatprep.subr.mxu0 0.0
      %1674 = vmatpush1.msra.mxu0 0.0
      %1675 = vmatprep.subr.mxu0 0.0
      %1676 = vmatpush1.msra.mxu0 0.0
      %1677 = vmatprep.subr.mxu0 0.0
      %1678 = vmatpush1.msra.mxu0 0.0
      %1679 = vmatprep.subr.mxu0 0.0
      %1680 = vmatpush1.msra.mxu0 0.0
      %1681 = vmatprep.subr.mxu0 0.0
      %1682 = vmatpush1.msra.mxu0 0.0
      %1683 = vmatprep.subr.mxu0 0.0
      %1684 = vmatpush1.msra.mxu0 0.0
      %1685 = vmatprep.subr.mxu0 0.0
      %1686 = vmatpush1.msra.mxu0 0.0
      %1687 = vmatprep.subr.mxu0 0.0
      %1688 = vmatpush1.msra.mxu0 0.0
      %1689 = vmatprep.subr.mxu0 0.0
      %1690 = vmatpush1.msra.mxu0 0.0
      %1691 = vmatprep.subr.mxu0 0.0
      %1692 = vmatpush1.msra.mxu0 0.0
      %1693 = vmatprep.subr.mxu0 0.0
      %1694 = vmatpush1.msra.mxu0 0.0
      %1695 = vmatprep.subr.mxu0 0.0
      %1696 = vmatpush1.msra.mxu0 0.0
      %1697 = vmatprep.subr.mxu0 0.0
      %1698 = vmatpush1.msra.mxu0 0.0
      %1699 = vmatprep.subr.mxu0 0.0
      %1700 = vmatpush1.msra.mxu0 0.0
      %1701 = vmatprep.subr.mxu0 0.0
      %1702 = vmatpush1.msra.mxu0 0.0
      %1703 = vmatprep.subr.mxu0 0.0
      %1704 = vmatpush1.msra.mxu0 0.0
      %1705 = vmatprep.subr.mxu0 0.0
      %1706 = vmatpush1.msra.mxu0 0.0
      %1707 = vmatprep.subr.mxu0 0.0
      %1708 = vmatpush1.msra.mxu0 0.0
      %1709 = vmatprep.subr.mxu0 0.0
      %1710 = vmatpush1.msra.mxu0 0.0
      %1711 = vmatprep.subr.mxu0 0.0
      %1712 = vmatpush1.msra.mxu0 0.0
      %1713 = vmatprep.subr.mxu0 0.0
      %1714 = vmatpush1.msra.mxu0 0.0
      %1715 = vmatprep.subr.mxu0 0.0
      %1716 = vmatpush1.msra.mxu0 0.0
      %1717 = vmatprep.subr.mxu0 0.0
      %1718 = vmatpush1.msra.mxu0 0.0
      %1719 = vmatprep.subr.mxu0 0.0
      %1720 = vmatpush1.msra.mxu0 0.0
      %1721 = vmatprep.subr.mxu0 0.0
      %1722 = vmatpush1.msra.mxu0 0.0
      %1723 = vmatprep.subr.mxu0 0.0
      %1724 = vmatpush1.msra.mxu0 0.0
      %1725 = vmatprep.subr.mxu0 0.0
      %1726 = vmatpush1.msra.mxu0 0.0
      %1727 = vmatprep.subr.mxu0 0.0
      %1728 = vmatpush1.msra.mxu0 0.0
      %1729 = vmatprep.mubr.f32.mxu0 0.0
      %v1730 = vand.u32 %v1249, 4294901760
      %1731 = vmatmul.mubr.f32.gmra.mrb[0].mxu0 %v1730
      %v1732 = vpop.f32.mrb[0].mxu0
      %v1733 = vadd.f32 %v1658, %v1732
      %v1734 = vpop.f32.mrb[0].mxu0
      %1735 = vdwg.mxu0
      %v1736 = vtanh.pop %v1733
      %1737 = vst.msk [vmem:[#allocation15] sm:$0x3] %vm736, %v1736
    $region49: #{tpu_custom_call.1} parent=1 // pred_fallthru
      _
    // Predicated region
    $region50: #{tpu_custom_call.1} parent=1 // pred_check
      _
    $region51: #{tpu_custom_call.1} parent=1 // pred_check_branch
      %1739 = sbr.rel (0) target = $region53
    $region52: #{tpu_custom_call.1} parent=1 // pred_region
      %s1741 = ssub.s32 32, 32
      %1742 = vsyncadd [#allocation8], %s1741
      %s1744 = sshll.u32 [#allocation15], 4
      %s1745 = int_to_ptr.vmem [resolvable:$true] %s1744
      %1747 = dma.vmem_to_hbm [thread:$0]  %s1745, 32, %s5, [#allocation8]
    $region53: #{tpu_custom_call.1} parent=1 // pred_fallthru
      _
    // Predicated region
    $region54: #{tpu_custom_call.1} parent=1 // pred_check
      _
    $region55: #{tpu_custom_call.1} parent=1 // pred_check_branch
      %1749 = sbr.rel (0) target = $region57
    $region56: #{tpu_custom_call.1} parent=1 // pred_region
      %1750 = dma.done [#allocation8], 32
    $region57: #{tpu_custom_call.1} parent=1 // pred_fallthru
      _
    %1751 = vsyncpa [#allocation7], 1
    %1752 = vsyncpa [#allocation10], 1
    %1753 = vsyncpa [#allocation13], 1
    %1754 = vsyncpa [#allocation8], 1

</llo_original>
